<compile_context>
chip_gen: v7x
topology: tpu7x:2x2x1
jax: 0.10.0
libtpu: 0.0.40
codegen_flags: <defaults>
</compile_context>

<pallas_src>
import functools

import jax
import jax.numpy as jnp
from jax.experimental import pallas as pl
from jax.experimental.pallas import tpu as pltpu

LANES = 128  # output / intermediate lane padding


def _round_up(x, m):
    return ((x + m - 1) // m) * m


def _bilinear_kernel(z_ref, c_ref, wz_ref, wc_ref, whzp_ref, bias_ref, out_ref,
                     *, precision):
    z = z_ref[...]                                   # (TB, z_dim)   compute_dtype
    c = c_ref[...]                                   # (TB, c_dim)   compute_dtype

    # Fused matmuls: Wz_cat = [wz_pad | wh_z_pad], Wc_cat = [wc_pad | wh_c_pad].
    # f32 accumulation regardless of input dtype.
    tz = jnp.dot(z, wz_ref[...], preferred_element_type=jnp.float32,
                 precision=precision)                # (TB, 2*LANES) f32
    tc = jnp.dot(c, wc_ref[...], preferred_element_type=jnp.float32,
                 precision=precision)                # (TB, 2*LANES) f32

    # 128-lane-aligned slices (no cross-lane shuffles); element-wise math in f32
    # (v5e has no bf16 VALU).
    z_mapped = tz[:, :LANES] + bias_ref[0:1, :]      # z_fc(z)   (padded lanes = 0)
    c_mapped = tc[:, :LANES] + bias_ref[1:2, :]      # c_fc(c)   (padded lanes = 0)
    z_prime = z_mapped * c_mapped                    # bilinear term, f32

    # hidden_fc(cat([z_prime, z, c])) = z_prime@Wh_zp + z@Wh_z + c@Wh_c + bh
    y = (jnp.dot(z_prime.astype(whzp_ref.dtype), whzp_ref[...],
                 preferred_element_type=jnp.float32, precision=precision)
         + tz[:, LANES:] + tc[:, LANES:] + bias_ref[2:3, :])

    out_ref[...] = jnp.maximum(y, 0.0).astype(out_ref.dtype)   # ReLU, lane-dense store


def _pad_cols(a, n):
    return jnp.pad(a, ((0, 0), (0, n - a.shape[1])))


def pack_params(p, z_dim, c_dim, compute_dtype):
    """Host-side weight fusion + lane padding to 128 + dtype cast (weights only)."""
    out_dim = z_dim + c_dim
    wz_cat = jnp.concatenate(
        [_pad_cols(p["wz"], LANES), _pad_cols(p["wh_z"], LANES)],
        axis=1).astype(compute_dtype)                                           # (z_dim, 256)
    wc_cat = jnp.concatenate(
        [_pad_cols(p["wc"], LANES), _pad_cols(p["wh_c"], LANES)],
        axis=1).astype(compute_dtype)                                           # (c_dim, 256)
    wh_zp = jnp.pad(p["wh_zp"],
                    ((0, LANES - z_dim), (0, LANES - out_dim))).astype(compute_dtype)  # (128, 128)
    # Biases stay f32 — element-wise path is kept in f32.
    bias = jnp.concatenate([_pad_cols(p["bz"], LANES),
                            _pad_cols(p["bc"], LANES),
                            _pad_cols(p["bh"], LANES)], axis=0).astype(jnp.float32)    # (3, 128)
    return wz_cat, wc_cat, wh_zp, bias


def _choose_batch_tile(B, row_align, tb_cap, min_steps=8):
    """Largest tile up to tb_cap, keeping >= min_steps grid steps for big batches."""
    B_aligned = _round_up(B, row_align)
    if B_aligned <= tb_cap:
        return B_aligned
    tb = _round_up(pl.cdiv(B_aligned, min_steps), row_align)
    return max(512, min(tb, tb_cap))


def bilinear_forward(z, c, params, *, compute_dtype=jnp.bfloat16,
                     out_dtype=jnp.float32, tb_cap=1024, keep_padded=False):
    B, z_dim = z.shape
    _, c_dim = c.shape
    out_dim = z_dim + c_dim
    assert z_dim <= LANES and out_dim <= LANES, "this kernel assumes dims <= 128 lanes"

    wz_cat, wc_cat, wh_zp, bias = pack_params(params, z_dim, c_dim, compute_dtype)
    z = z.astype(compute_dtype)
    c = c.astype(compute_dtype)

    # Batch tiling: 16-row aligned for bf16 sublane packing, 8 for f32.
    row_align = 16 if jnp.dtype(compute_dtype).itemsize == 2 else 8
    TB = _choose_batch_tile(B, row_align, tb_cap)
    B_pad = _round_up(B, TB)
    if B_pad != B:
        z = jnp.pad(z, ((0, B_pad - B), (0, 0)))
        c = jnp.pad(c, ((0, B_pad - B), (0, 0)))
    grid = (B_pad // TB,)

    # f32 operands on the MXU default to reduced-precision passes; request full
    # precision only when exact module numerics are wanted.
    precision = (jax.lax.Precision.HIGHEST
                 if jnp.dtype(compute_dtype) == jnp.dtype(jnp.float32) else None)

    in_b = jnp.dtype(compute_dtype).itemsize
    out_b = jnp.dtype(out_dtype).itemsize
    flops = 2 * B_pad * (z_dim * 2 * LANES + c_dim * 2 * LANES + LANES * LANES)
    bytes_accessed = (in_b * (z.size + c.size + wz_cat.size + wc_cat.size + wh_zp.size)
                      + 4 * bias.size + out_b * B_pad * LANES)

    out_padded = pl.pallas_call(
        functools.partial(_bilinear_kernel, precision=precision),
        out_shape=jax.ShapeDtypeStruct((B_pad, LANES), out_dtype),
        grid=grid,
        in_specs=[
            pl.BlockSpec((TB, z_dim), lambda i: (i, 0)),      # z, batch-tiled
            pl.BlockSpec((TB, c_dim), lambda i: (i, 0)),      # c, batch-tiled
            pl.BlockSpec(wz_cat.shape, lambda i: (0, 0)),     # fused z weights, resident
            pl.BlockSpec(wc_cat.shape, lambda i: (0, 0)),     # fused c weights, resident
            pl.BlockSpec(wh_zp.shape, lambda i: (0, 0)),      # hidden weight for z_prime
            pl.BlockSpec(bias.shape, lambda i: (0, 0)),       # packed biases (f32)
        ],
        out_specs=pl.BlockSpec((TB, LANES), lambda i: (i, 0)),
        compiler_params=pltpu.CompilerParams(
            dimension_semantics=("parallel",)),
        cost_estimate=pl.CostEstimate(
            flops=flops, transcendentals=0, bytes_accessed=bytes_accessed),
    )(z, c, wz_cat, wc_cat, wh_zp, bias)

    if keep_padded:
        # Lane padding (cols >= out_dim) is zero; batch-padding rows (>= B) are NOT.
        return out_padded
    # Un-pad: drop batch padding rows and lane padding columns (padded cols are 0).
    return out_padded[:B, :out_dim]


def init_params(key, z_dim, c_dim):
    """Deterministic init mimicking nn.Linear's U(-1/sqrt(fan_in), +1/sqrt(fan_in))."""
    out_dim = z_dim + c_dim
    hid_in = z_dim + z_dim + c_dim

    def linear(key, fan_in, fan_out):
        kw, kb = jax.random.split(key)
        bound = 1.0 / jnp.sqrt(fan_in)
        w = jax.random.uniform(kw, (fan_in, fan_out), jnp.float32, -bound, bound)  # (in, out)
        b = jax.random.uniform(kb, (1, fan_out), jnp.float32, -bound, bound)
        return w, b

    k1, k2, k3 = jax.random.split(key, 3)
    wz, bz = linear(k1, z_dim, z_dim)          # z_fc
    wc, bc = linear(k2, c_dim, z_dim)          # c_fc
    wh, bh = linear(k3, hid_in, out_dim)       # hidden_fc, (2*z+c, z+c)

    return {
        "wz": wz, "bz": bz,
        "wc": wc, "bc": bc,
        # split hidden weight rows to match cat([z_prime, z, c], dim=1)
        "wh_zp": wh[:z_dim, :],
        "wh_z": wh[z_dim:2 * z_dim, :],
        "wh_c": wh[2 * z_dim:, :],
        "bh": bh,
    }


def reference_forward(z, c, p):
    z_mapped = z @ p["wz"] + p["bz"]
    c_mapped = c @ p["wc"] + p["bc"]
    z_prime = z_mapped * c_mapped
    combined = jnp.concatenate([z_prime, z, c], axis=1)
    wh = jnp.concatenate([p["wh_zp"], p["wh_z"], p["wh_c"]], axis=0)
    return jax.nn.relu(combined @ wh + p["bh"])


if __name__ == "__main__":
    B, z_dim, c_dim = 8, 32, 16

    key = jax.random.PRNGKey(0)
    kz, kc, kp = jax.random.split(key, 3)
    z = jax.random.normal(kz, (B, z_dim), jnp.float32)
    c = jax.random.normal(kc, (B, c_dim), jnp.float32)
    params = init_params(kp, z_dim, c_dim)

    ref = reference_forward(z, c, params)

    # Exact-semantics path: f32 inputs/weights, HIGHEST matmul precision.
    out_f32 = jax.block_until_ready(
        bilinear_forward(z, c, params, compute_dtype=jnp.float32))
    assert out_f32.shape == (B, z_dim + c_dim)
    assert jnp.allclose(out_f32, ref, atol=1e-5, rtol=1e-5)

    # Default fast path: bf16 inputs/weights, f32 accumulate + element-wise math.
    out_bf16 = jax.block_until_ready(bilinear_forward(z, c, params))
    out_bf16 = jax.block_until_ready(out_bf16)
    assert out_bf16.shape == (B, z_dim + c_dim)
    assert jnp.allclose(out_bf16, ref, atol=5e-2, rtol=5e-2)

    print("KERNEL_OK")
</pallas_src>

<mosaic_0001>
module attributes {stable_mosaic.version = 11 : i64} {
  func.func @_bilinear_kernel(%arg0: i32, %arg1: memref<8x32xf32, #tpu.memory_space<vmem>>, %arg2: memref<8x16xf32, #tpu.memory_space<vmem>>, %arg3: memref<32x256xf32, #tpu.memory_space<vmem>>, %arg4: memref<16x256xf32, #tpu.memory_space<vmem>>, %arg5: memref<128x128xf32, #tpu.memory_space<vmem>>, %arg6: memref<3x128xf32, #tpu.memory_space<vmem>>, %arg7: memref<8x128xf32, #tpu.memory_space<vmem>>) attributes {dimension_semantics = [#tpu.dimension_semantics<parallel>], iteration_bounds = array<i64: 1>, scalar_prefetch = 0 : i64, scratch_operands = 0 : i64, tpu.core_type = #tpu.core_type<tc>, window_params = [{transform_indices = @transform_0, window_bounds = array<i64: 8, 32>}, {transform_indices = @transform_1, window_bounds = array<i64: 8, 16>}, {pipeline_mode = #tpu.pipeline_mode<synchronous>, transform_indices = @transform_2, window_bounds = array<i64: 32, 256>}, {pipeline_mode = #tpu.pipeline_mode<synchronous>, transform_indices = @transform_3, window_bounds = array<i64: 16, 256>}, {pipeline_mode = #tpu.pipeline_mode<synchronous>, transform_indices = @transform_4, window_bounds = array<i64: 128, 128>}, {pipeline_mode = #tpu.pipeline_mode<synchronous>, transform_indices = @transform_5, window_bounds = array<i64: 3, 128>}, {transform_indices = @transform_6, window_bounds = array<i64: 8, 128>}]} {
    %c0 = arith.constant 0 : index
    %c0_0 = arith.constant 0 : index
    %0 = vector.load %arg1[%c0, %c0_0] : memref<8x32xf32, #tpu.memory_space<vmem>>, vector<8x32xf32>
    %c0_1 = arith.constant 0 : index
    %c0_2 = arith.constant 0 : index
    %1 = vector.load %arg2[%c0_1, %c0_2] : memref<8x16xf32, #tpu.memory_space<vmem>>, vector<8x16xf32>
    %c0_3 = arith.constant 0 : index
    %c0_4 = arith.constant 0 : index
    %2 = vector.load %arg3[%c0_3, %c0_4] : memref<32x256xf32, #tpu.memory_space<vmem>>, vector<32x256xf32>
    %cst = arith.constant dense<0.000000e+00> : vector<8x256xf32>
    %3 = tpu.matmul %0, %2, %cst {dimension_numbers = #tpu.dot_dimension_numbers<[1], [0], [0], [1], [0, 0, 1, 1], [], []>, precision = #tpu.contract_precision<fp32>} : vector<8x32xf32>, vector<32x256xf32>, vector<8x256xf32> -> vector<8x256xf32>
    %c0_5 = arith.constant 0 : index
    %c0_6 = arith.constant 0 : index
    %4 = vector.load %arg4[%c0_5, %c0_6] : memref<16x256xf32, #tpu.memory_space<vmem>>, vector<16x256xf32>
    %cst_7 = arith.constant dense<0.000000e+00> : vector<8x256xf32>
    %5 = tpu.matmul %1, %4, %cst_7 {dimension_numbers = #tpu.dot_dimension_numbers<[1], [0], [0], [1], [0, 0, 1, 1], [], []>, precision = #tpu.contract_precision<fp32>} : vector<8x16xf32>, vector<16x256xf32>, vector<8x256xf32> -> vector<8x256xf32>
    %6 = vector.extract_strided_slice %3 {offsets = [0, 0], sizes = [8, 128], strides = [1, 1]} : vector<8x256xf32> to vector<8x128xf32>
    %c0_8 = arith.constant 0 : index
    %c0_9 = arith.constant 0 : index
    %7 = vector.load %arg6[%c0_8, %c0_9] : memref<3x128xf32, #tpu.memory_space<vmem>>, vector<1x128xf32>
    %8 = vector.broadcast %7 : vector<1x128xf32> to vector<8x128xf32>
    %9 = arith.addf %6, %8 : vector<8x128xf32>
    %10 = vector.extract_strided_slice %5 {offsets = [0, 0], sizes = [8, 128], strides = [1, 1]} : vector<8x256xf32> to vector<8x128xf32>
    %c1 = arith.constant 1 : index
    %c0_10 = arith.constant 0 : index
    %11 = vector.load %arg6[%c1, %c0_10] : memref<3x128xf32, #tpu.memory_space<vmem>>, vector<1x128xf32>
    %12 = vector.broadcast %11 : vector<1x128xf32> to vector<8x128xf32>
    %13 = arith.addf %10, %12 : vector<8x128xf32>
    %14 = arith.mulf %9, %13 : vector<8x128xf32>
    %c0_11 = arith.constant 0 : index
    %c0_12 = arith.constant 0 : index
    %15 = vector.load %arg5[%c0_11, %c0_12] : memref<128x128xf32, #tpu.memory_space<vmem>>, vector<128x128xf32>
    %cst_13 = arith.constant dense<0.000000e+00> : vector<8x128xf32>
    %16 = tpu.matmul %14, %15, %cst_13 {dimension_numbers = #tpu.dot_dimension_numbers<[1], [0], [0], [1], [0, 0, 1, 1], [], []>, precision = #tpu.contract_precision<fp32>} : vector<8x128xf32>, vector<128x128xf32>, vector<8x128xf32> -> vector<8x128xf32>
    %17 = vector.extract_strided_slice %3 {offsets = [0, 128], sizes = [8, 128], strides = [1, 1]} : vector<8x256xf32> to vector<8x128xf32>
    %18 = arith.addf %16, %17 : vector<8x128xf32>
    %19 = vector.extract_strided_slice %5 {offsets = [0, 128], sizes = [8, 128], strides = [1, 1]} : vector<8x256xf32> to vector<8x128xf32>
    %20 = arith.addf %18, %19 : vector<8x128xf32>
    %c2 = arith.constant 2 : index
    %c0_14 = arith.constant 0 : index
    %21 = vector.load %arg6[%c2, %c0_14] : memref<3x128xf32, #tpu.memory_space<vmem>>, vector<1x128xf32>
    %22 = vector.broadcast %21 : vector<1x128xf32> to vector<8x128xf32>
    %23 = arith.addf %20, %22 : vector<8x128xf32>
    %cst_15 = arith.constant 0.000000e+00 : f32
    %24 = vector.broadcast %cst_15 : f32 to vector<8x128xf32>
    %25 = arith.maximumf %23, %24 : vector<8x128xf32>
    %c0_16 = arith.constant 0 : index
    %c0_17 = arith.constant 0 : index
    %26 = vector.load %arg7[%c0_16, %c0_17] : memref<8x128xf32, #tpu.memory_space<vmem>>, vector<8x128xf32>
    tpu.vector_store %arg7[%c0_16, %c0_17], %25 {strides = array<i32>} : memref<8x128xf32, #tpu.memory_space<vmem>>, vector<8x128xf32>,
    return
  }
  func.func @transform_0(%arg0: i32) -> (i32, i32) {
    %c0_i32 = arith.constant 0 : i32
    %c0_i32_0 = arith.constant 0 : i32
    return %arg0, %c0_i32 : i32, i32
  }
  func.func @transform_1(%arg0: i32) -> (i32, i32) {
    %c0_i32 = arith.constant 0 : i32
    %c0_i32_0 = arith.constant 0 : i32
    return %arg0, %c0_i32 : i32, i32
  }
  func.func @transform_2(%arg0: i32) -> (i32, i32) {
    %c0_i32 = arith.constant 0 : i32
    %c0_i32_0 = arith.constant 0 : i32
    %c0_i32_1 = arith.constant 0 : i32
    return %c0_i32, %c0_i32_0 : i32, i32
  }
  func.func @transform_3(%arg0: i32) -> (i32, i32) {
    %c0_i32 = arith.constant 0 : i32
    %c0_i32_0 = arith.constant 0 : i32
    %c0_i32_1 = arith.constant 0 : i32
    return %c0_i32, %c0_i32_0 : i32, i32
  }
  func.func @transform_4(%arg0: i32) -> (i32, i32) {
    %c0_i32 = arith.constant 0 : i32
    %c0_i32_0 = arith.constant 0 : i32
    %c0_i32_1 = arith.constant 0 : i32
    return %c0_i32, %c0_i32_0 : i32, i32
  }
  func.func @transform_5(%arg0: i32) -> (i32, i32) {
    %c0_i32 = arith.constant 0 : i32
    %c0_i32_0 = arith.constant 0 : i32
    %c0_i32_1 = arith.constant 0 : i32
    return %c0_i32, %c0_i32_0 : i32, i32
  }
  func.func @transform_6(%arg0: i32) -> (i32, i32) {
    %c0_i32 = arith.constant 0 : i32
    %c0_i32_0 = arith.constant 0 : i32
    return %arg0, %c0_i32 : i32, i32
  }
}

</mosaic_0001>

<llo_original>
// kernel: tpu_custom_call.1
$region0: #{tpu_custom_call.1}
  #allocation0 [shape = 'u32[]', space=smem, size = 0x4, offset = 0x4, fixed_abs, tag = 'smem constant byte address 0x4 - core index']
  #allocation1 [shape = 'u32[144,128]{1,0:T(1,128)}', space=vmem, size = 0x12000, scoped, tag = 'internal scratch']
  %s0 = inlined_call_operand.hbm [shape: f32[8,32], index: 0, kind: input, shape index: {}]
  %s1 = inlined_call_operand.hbm [shape: f32[8,16], index: 1, kind: input, shape index: {}]
  %s2 = inlined_call_operand.hbm [shape: f32[32,256], index: 2, kind: input, shape index: {}]
  %s3 = inlined_call_operand.hbm [shape: f32[16,256], index: 3, kind: input, shape index: {}]
  %s4 = inlined_call_operand.hbm [shape: f32[128,128], index: 4, kind: input, shape index: {}]
  %s5 = inlined_call_operand.vmem [shape: f32[3,128], index: 5, kind: input, shape index: {}]
  %s6 = inlined_call_operand.hbm [shape: f32[8,128], index: 6, kind: output, shape index: {}]
  %s7 = sld [smem:[#allocation0]]
  $region54: #{tpu_custom_call.1} parent=0
    _
  %s9 = ssub.s32 1, %s7
  %s10 = scalar_select 0, %s9, %s7
  $region1: #{tpu_custom_call.1} parent=0
    #allocation2 [shape = 'u8[4096]{0}', space=vmem, size = 0x1000, scoped, tag = 'input window, operand 0, single buffered']
    #allocation3 [shape = 's32[1]{0}', space=sflag, size = 0x4, scoped, tag = 'scoped memory for tpu_custom_call.1']
    #allocation4 [shape = 's32[1]{0}', space=sflag, size = 0x4, scoped, tag = 'scoped memory for tpu_custom_call.1']
    #allocation5 [shape = 'u8[4096]{0}', space=vmem, size = 0x1000, scoped, tag = 'input window, operand 1, single buffered']
    #allocation6 [shape = 's32[1]{0}', space=sflag, size = 0x4, scoped, tag = 'scoped memory for tpu_custom_call.1']
    #allocation7 [shape = 'u8[32768]{0}', space=vmem, size = 0x8000, scoped, tag = 'input window, operand 2, single buffered']
    #allocation8 [shape = 'u8[16384]{0}', space=vmem, size = 0x4000, scoped, tag = 'input window, operand 3, single buffered']
    #allocation9 [shape = 's32[1]{0}', space=sflag, size = 0x4, scoped, tag = 'scoped memory for tpu_custom_call.1']
    #allocation10 [shape = 'u8[65536]{0}', space=vmem, size = 0x10000, scoped, tag = 'input window, operand 4, single buffered']
    #allocation11 [shape = 'u8[4096]{0}', space=vmem, size = 0x1000, scoped, tag = 'output window, operand 0, single buffered']
    %11 = vsyncpa [#allocation3], 0
    %12 = vsyncpa [#allocation6], 0
    %13 = vsyncpa [#allocation9], 0
    %14 = vsyncpa [#allocation4], 0
    // Predicated region
    $region2: #{tpu_custom_call.1} parent=1 // pred_check
      _
    $region3: #{tpu_custom_call.1} parent=1 // pred_check_branch
      %16 = sbr.rel (0) target = $region5
    $region4: #{tpu_custom_call.1} parent=1 // pred_region
      %s18 = ssub.s32 128, 128
      %19 = vsyncadd [#allocation3], %s18
      %s21 = sshll.u32 [#allocation2], 4
      %s22 = int_to_ptr.vmem [resolvable:$true] %s21
      %24 = dma.hbm_to_vmem [thread:$0]  %s0, 128, %s22, [#allocation3]
    $region5: #{tpu_custom_call.1} parent=1 // pred_fallthru
      _
    // Predicated region
    $region6: #{tpu_custom_call.1} parent=1 // pred_check
      _
    $region7: #{tpu_custom_call.1} parent=1 // pred_check_branch
      %26 = sbr.rel (0) target = $region9
    $region8: #{tpu_custom_call.1} parent=1 // pred_region
      %s28 = ssub.s32 128, 128
      %29 = vsyncadd [#allocation6], %s28
      %s31 = sshll.u32 [#allocation5], 4
      %s32 = int_to_ptr.vmem [resolvable:$true] %s31
      %34 = dma.hbm_to_vmem [thread:$0]  %s1, 128, %s32, [#allocation6]
    $region9: #{tpu_custom_call.1} parent=1 // pred_fallthru
      _
    // Predicated region
    $region10: #{tpu_custom_call.1} parent=1 // pred_check
      _
    $region11: #{tpu_custom_call.1} parent=1 // pred_check_branch
      %36 = sbr.rel (0) target = $region13
    $region12: #{tpu_custom_call.1} parent=1 // pred_region
      %s38 = ssub.s32 1024, 1024
      %39 = vsyncadd [#allocation6], %s38
      %s40 = sshll.u32 [#allocation7], 4
      %s41 = int_to_ptr.vmem [resolvable:$true] %s40
      %46 = dma.hbm_to_vmem [thread:$0]  %s2, 1024, %s41, [#allocation6], 256, 256, 16
    $region13: #{tpu_custom_call.1} parent=1 // pred_fallthru
      _
    // Predicated region
    $region14: #{tpu_custom_call.1} parent=1 // pred_check
      _
    $region15: #{tpu_custom_call.1} parent=1 // pred_check_branch
      %48 = sbr.rel (0) target = $region17
    $region16: #{tpu_custom_call.1} parent=1 // pred_region
      %s50 = ssub.s32 512, 512
      %51 = vsyncadd [#allocation9], %s50
      %s52 = sshll.u32 [#allocation8], 4
      %s53 = int_to_ptr.vmem [resolvable:$true] %s52
      %58 = dma.hbm_to_vmem [thread:$0]  %s3, 512, %s53, [#allocation9], 256, 256, 16
    $region17: #{tpu_custom_call.1} parent=1 // pred_fallthru
      _
    // Predicated region
    $region18: #{tpu_custom_call.1} parent=1 // pred_check
      _
    $region19: #{tpu_custom_call.1} parent=1 // pred_check_branch
      %60 = sbr.rel (0) target = $region21
    $region20: #{tpu_custom_call.1} parent=1 // pred_region
      %s62 = ssub.s32 2048, 2048
      %63 = vsyncadd [#allocation9], %s62
      %s64 = sshll.u32 [#allocation10], 4
      %s65 = int_to_ptr.vmem [resolvable:$true] %s64
      %70 = dma.hbm_to_vmem [thread:$0]  %s4, 2048, %s65, [#allocation9], 128, 128, 8
    $region21: #{tpu_custom_call.1} parent=1 // pred_fallthru
      _
    // Predicated region
    $region22: #{tpu_custom_call.1} parent=1 // pred_check
      _
    $region23: #{tpu_custom_call.1} parent=1 // pred_check_branch
      %72 = sbr.rel (0) target = $region25
    $region24: #{tpu_custom_call.1} parent=1 // pred_region
      _
    $region25: #{tpu_custom_call.1} parent=1 // pred_fallthru
      _
    // Predicated region
    $region26: #{tpu_custom_call.1} parent=1 // pred_check
      _
    $region27: #{tpu_custom_call.1} parent=1 // pred_check_branch
      %74 = sbr.rel (0) target = $region29
    $region28: #{tpu_custom_call.1} parent=1 // pred_region
      %75 = dma.done [#allocation3], 128
    $region29: #{tpu_custom_call.1} parent=1 // pred_fallthru
      _
    // Predicated region
    $region30: #{tpu_custom_call.1} parent=1 // pred_check
      _
    $region31: #{tpu_custom_call.1} parent=1 // pred_check_branch
      %77 = sbr.rel (0) target = $region33
    $region32: #{tpu_custom_call.1} parent=1 // pred_region
      %78 = dma.done [#allocation6], 128
    $region33: #{tpu_custom_call.1} parent=1 // pred_fallthru
      _
    // Predicated region
    $region34: #{tpu_custom_call.1} parent=1 // pred_check
      _
    $region35: #{tpu_custom_call.1} parent=1 // pred_check_branch
      %80 = sbr.rel (0) target = $region37
    $region36: #{tpu_custom_call.1} parent=1 // pred_region
      %81 = dma.done [#allocation6], 1024
    $region37: #{tpu_custom_call.1} parent=1 // pred_fallthru
      _
    // Predicated region
    $region38: #{tpu_custom_call.1} parent=1 // pred_check
      _
    $region39: #{tpu_custom_call.1} parent=1 // pred_check_branch
      %83 = sbr.rel (0) target = $region41
    $region40: #{tpu_custom_call.1} parent=1 // pred_region
      %84 = dma.done [#allocation9], 512
    $region41: #{tpu_custom_call.1} parent=1 // pred_fallthru
      _
    // Predicated region
    $region42: #{tpu_custom_call.1} parent=1 // pred_check
      _
    $region43: #{tpu_custom_call.1} parent=1 // pred_check_branch
      %86 = sbr.rel (0) target = $region45
    $region44: #{tpu_custom_call.1} parent=1 // pred_region
      %87 = dma.done [#allocation9], 2048
    $region45: #{tpu_custom_call.1} parent=1 // pred_fallthru
      _
    %v88 = vld [vmem:[#allocation2] sm:$0xff]
    %v89 = vld [vmem:[#allocation5] sm:$0xff]
    %v90 = vld [vmem:[#allocation7] sm:$0xff]
    %v91 = vld [vmem:[#allocation7 + $0x8] sm:$0xff]
    %v92 = vld [vmem:[#allocation7 + $0x10] sm:$0xff]
    %v93 = vld [vmem:[#allocation7 + $0x18] sm:$0xff]
    %v94 = vld [vmem:[#allocation7 + $0x20] sm:$0xff]
    %v95 = vld [vmem:[#allocation7 + $0x28] sm:$0xff]
    %v96 = vld [vmem:[#allocation7 + $0x30] sm:$0xff]
    %v97 = vld [vmem:[#allocation7 + $0x38] sm:$0xff]
    %vm98 = vcmask 261120
    %v100 = vsel %vm98, %v88, 0
    %v102 = vand.u32 %v91, 4294901760
    %103 = vmatprep.subr.mxu0 %v102
    %v104 = vand.u32 %v90, 4294901760
    %105 = vmatpush1.msra.mxu0 %v104
    %v106 = vand.u32 %v93, 4294901760
    %107 = vmatprep.subr.mxu0 %v106
    %v108 = vand.u32 %v92, 4294901760
    %109 = vmatpush1.msra.mxu0 %v108
    %v110 = vand.u32 %v95, 4294901760
    %111 = vmatprep.subr.mxu0 %v110
    %v112 = vand.u32 %v94, 4294901760
    %113 = vmatpush1.msra.mxu0 %v112
    %v114 = vand.u32 %v97, 4294901760
    %115 = vmatprep.subr.mxu0 %v114
    %v116 = vand.u32 %v96, 4294901760
    %117 = vmatpush1.msra.mxu0 %v116
    %118 = vmatprep.subr.mxu0 0.0
    %119 = vmatpush1.msra.mxu0 0.0
    %120 = vmatprep.subr.mxu0 0.0
    %121 = vmatpush1.msra.mxu0 0.0
    %122 = vmatprep.subr.mxu0 0.0
    %123 = vmatpush1.msra.mxu0 0.0
    %124 = vmatprep.subr.mxu0 0.0
    %125 = vmatpush1.msra.mxu0 0.0
    %126 = vmatprep.subr.mxu0 0.0
    %127 = vmatpush1.msra.mxu0 0.0
    %128 = vmatprep.subr.mxu0 0.0
    %129 = vmatpush1.msra.mxu0 0.0
    %130 = vmatprep.subr.mxu0 0.0
    %131 = vmatpush1.msra.mxu0 0.0
    %132 = vmatprep.subr.mxu0 0.0
    %133 = vmatpush1.msra.mxu0 0.0
    %134 = vmatprep.subr.mxu0 0.0
    %135 = vmatpush1.msra.mxu0 0.0
    %136 = vmatprep.subr.mxu0 0.0
    %137 = vmatpush1.msra.mxu0 0.0
    %138 = vmatprep.subr.mxu0 0.0
    %139 = vmatpush1.msra.mxu0 0.0
    %140 = vmatprep.subr.mxu0 0.0
    %141 = vmatpush1.msra.mxu0 0.0
    %142 = vmatprep.subr.mxu0 0.0
    %143 = vmatpush1.msra.mxu0 0.0
    %144 = vmatprep.subr.mxu0 0.0
    %145 = vmatpush1.msra.mxu0 0.0
    %146 = vmatprep.subr.mxu0 0.0
    %147 = vmatpush1.msra.mxu0 0.0
    %148 = vmatprep.subr.mxu0 0.0
    %149 = vmatpush1.msra.mxu0 0.0
    %150 = vmatprep.subr.mxu0 0.0
    %151 = vmatpush1.msra.mxu0 0.0
    %152 = vmatprep.subr.mxu0 0.0
    %153 = vmatpush1.msra.mxu0 0.0
    %154 = vmatprep.subr.mxu0 0.0
    %155 = vmatpush1.msra.mxu0 0.0
    %156 = vmatprep.subr.mxu0 0.0
    %157 = vmatpush1.msra.mxu0 0.0
    %158 = vmatprep.subr.mxu0 0.0
    %159 = vmatpush1.msra.mxu0 0.0
    %160 = vmatprep.subr.mxu0 0.0
    %161 = vmatpush1.msra.mxu0 0.0
    %162 = vmatprep.subr.mxu0 0.0
    %163 = vmatpush1.msra.mxu0 0.0
    %164 = vmatprep.subr.mxu0 0.0
    %165 = vmatpush1.msra.mxu0 0.0
    %166 = vmatprep.subr.mxu0 0.0
    %167 = vmatpush1.msra.mxu0 0.0
    %168 = vmatprep.subr.mxu0 0.0
    %169 = vmatpush1.msra.mxu0 0.0
    %170 = vmatprep.subr.mxu0 0.0
    %171 = vmatpush1.msra.mxu0 0.0
    %172 = vmatprep.subr.mxu0 0.0
    %173 = vmatpush1.msra.mxu0 0.0
    %174 = vmatprep.mubr.f32.mxu0 0.0
    %v175 = vand.u32 %v100, 4294901760
    %v176 = vsub.f32 %v100, %v175
    %v177 = vand.u32 %v176, 4294901760
    %v178 = vsub.f32 %v176, %v177
    %v179 = vand.u32 %v178, 4294901760
    %180 = vmatmul.mubr.f32.gmra.mrb[0].mxu0 %v179
    %v181 = vpop.f32.mrb[0].mxu0
    %v182 = vadd.f32 0.0, %v181
    %v183 = vpop.f32.mrb[0].mxu0
    %v184 = vadd.f32 0.0, %v183
    %185 = vdwg.mxu0
    %v186 = vand.u32 %v91, 4294901760
    %v187 = vsub.f32 %v91, %v186
    %v188 = vand.u32 %v187, 4294901760
    %v189 = vsub.f32 %v187, %v188
    %v190 = vand.u32 %v189, 4294901760
    %191 = vmatprep.subr.mxu0 %v190
    %v192 = vand.u32 %v90, 4294901760
    %v193 = vsub.f32 %v90, %v192
    %v194 = vand.u32 %v193, 4294901760
    %v195 = vsub.f32 %v193, %v194
    %v196 = vand.u32 %v195, 4294901760
    %197 = vmatpush1.msra.mxu0 %v196
    %v198 = vand.u32 %v93, 4294901760
    %v199 = vsub.f32 %v93, %v198
    %v200 = vand.u32 %v199, 4294901760
    %v201 = vsub.f32 %v199, %v200
    %v202 = vand.u32 %v201, 4294901760
    %203 = vmatprep.subr.mxu0 %v202
    %v204 = vand.u32 %v92, 4294901760
    %v205 = vsub.f32 %v92, %v204
    %v206 = vand.u32 %v205, 4294901760
    %v207 = vsub.f32 %v205, %v206
    %v208 = vand.u32 %v207, 4294901760
    %209 = vmatpush1.msra.mxu0 %v208
    %v210 = vand.u32 %v95, 4294901760
    %v211 = vsub.f32 %v95, %v210
    %v212 = vand.u32 %v211, 4294901760
    %v213 = vsub.f32 %v211, %v212
    %v214 = vand.u32 %v213, 4294901760
    %215 = vmatprep.subr.mxu0 %v214
    %v216 = vand.u32 %v94, 4294901760
    %v217 = vsub.f32 %v94, %v216
    %v218 = vand.u32 %v217, 4294901760
    %v219 = vsub.f32 %v217, %v218
    %v220 = vand.u32 %v219, 4294901760
    %221 = vmatpush1.msra.mxu0 %v220
    %v222 = vand.u32 %v97, 4294901760
    %v223 = vsub.f32 %v97, %v222
    %v224 = vand.u32 %v223, 4294901760
    %v225 = vsub.f32 %v223, %v224
    %v226 = vand.u32 %v225, 4294901760
    %227 = vmatprep.subr.mxu0 %v226
    %v228 = vand.u32 %v96, 4294901760
    %v229 = vsub.f32 %v96, %v228
    %v230 = vand.u32 %v229, 4294901760
    %v231 = vsub.f32 %v229, %v230
    %v232 = vand.u32 %v231, 4294901760
    %233 = vmatpush1.msra.mxu0 %v232
    %234 = vmatprep.subr.mxu0 0.0
    %235 = vmatpush1.msra.mxu0 0.0
    %236 = vmatprep.subr.mxu0 0.0
    %237 = vmatpush1.msra.mxu0 0.0
    %238 = vmatprep.subr.mxu0 0.0
    %239 = vmatpush1.msra.mxu0 0.0
    %240 = vmatprep.subr.mxu0 0.0
    %241 = vmatpush1.msra.mxu0 0.0
    %242 = vmatprep.subr.mxu0 0.0
    %243 = vmatpush1.msra.mxu0 0.0
    %244 = vmatprep.subr.mxu0 0.0
    %245 = vmatpush1.msra.mxu0 0.0
    %246 = vmatprep.subr.mxu0 0.0
    %247 = vmatpush1.msra.mxu0 0.0
    %248 = vmatprep.subr.mxu0 0.0
    %249 = vmatpush1.msra.mxu0 0.0
    %250 = vmatprep.subr.mxu0 0.0
    %251 = vmatpush1.msra.mxu0 0.0
    %252 = vmatprep.subr.mxu0 0.0
    %253 = vmatpush1.msra.mxu0 0.0
    %254 = vmatprep.subr.mxu0 0.0
    %255 = vmatpush1.msra.mxu0 0.0
    %256 = vmatprep.subr.mxu0 0.0
    %257 = vmatpush1.msra.mxu0 0.0
    %258 = vmatprep.subr.mxu0 0.0
    %259 = vmatpush1.msra.mxu0 0.0
    %260 = vmatprep.subr.mxu0 0.0
    %261 = vmatpush1.msra.mxu0 0.0
    %262 = vmatprep.subr.mxu0 0.0
    %263 = vmatpush1.msra.mxu0 0.0
    %264 = vmatprep.subr.mxu0 0.0
    %265 = vmatpush1.msra.mxu0 0.0
    %266 = vmatprep.subr.mxu0 0.0
    %267 = vmatpush1.msra.mxu0 0.0
    %268 = vmatprep.subr.mxu0 0.0
    %269 = vmatpush1.msra.mxu0 0.0
    %270 = vmatprep.subr.mxu0 0.0
    %271 = vmatpush1.msra.mxu0 0.0
    %272 = vmatprep.subr.mxu0 0.0
    %273 = vmatpush1.msra.mxu0 0.0
    %274 = vmatprep.subr.mxu0 0.0
    %275 = vmatpush1.msra.mxu0 0.0
    %276 = vmatprep.subr.mxu0 0.0
    %277 = vmatpush1.msra.mxu0 0.0
    %278 = vmatprep.subr.mxu0 0.0
    %279 = vmatpush1.msra.mxu0 0.0
    %280 = vmatprep.subr.mxu0 0.0
    %281 = vmatpush1.msra.mxu0 0.0
    %282 = vmatprep.subr.mxu0 0.0
    %283 = vmatpush1.msra.mxu0 0.0
    %284 = vmatprep.subr.mxu0 0.0
    %285 = vmatpush1.msra.mxu0 0.0
    %286 = vmatprep.subr.mxu0 0.0
    %287 = vmatpush1.msra.mxu0 0.0
    %288 = vmatprep.subr.mxu0 0.0
    %289 = vmatpush1.msra.mxu0 0.0
    %290 = vmatprep.mubr.f32.mxu0 0.0
    %v291 = vand.u32 %v100, 4294901760
    %292 = vmatmul.mubr.f32.gmra.mrb[0].mxu0 %v291
    %v293 = vpop.f32.mrb[0].mxu0
    %v294 = vadd.f32 %v182, %v293
    %v295 = vpop.f32.mrb[0].mxu0
    %v296 = vadd.f32 %v184, %v295
    %297 = vdwg.mxu0
    %v298 = vand.u32 %v91, 4294901760
    %v299 = vsub.f32 %v91, %v298
    %300 = vmatprep.subr.mxu0 %v299
    %v301 = vand.u32 %v90, 4294901760
    %v302 = vsub.f32 %v90, %v301
    %303 = vmatpush1.msra.mxu0 %v302
    %v304 = vand.u32 %v93, 4294901760
    %v305 = vsub.f32 %v93, %v304
    %306 = vmatprep.subr.mxu0 %v305
    %v307 = vand.u32 %v92, 4294901760
    %v308 = vsub.f32 %v92, %v307
    %309 = vmatpush1.msra.mxu0 %v308
    %v310 = vand.u32 %v95, 4294901760
    %v311 = vsub.f32 %v95, %v310
    %312 = vmatprep.subr.mxu0 %v311
    %v313 = vand.u32 %v94, 4294901760
    %v314 = vsub.f32 %v94, %v313
    %315 = vmatpush1.msra.mxu0 %v314
    %v316 = vand.u32 %v97, 4294901760
    %v317 = vsub.f32 %v97, %v316
    %318 = vmatprep.subr.mxu0 %v317
    %v319 = vand.u32 %v96, 4294901760
    %v320 = vsub.f32 %v96, %v319
    %321 = vmatpush1.msra.mxu0 %v320
    %322 = vmatprep.subr.mxu0 0.0
    %323 = vmatpush1.msra.mxu0 0.0
    %324 = vmatprep.subr.mxu0 0.0
    %325 = vmatpush1.msra.mxu0 0.0
    %326 = vmatprep.subr.mxu0 0.0
    %327 = vmatpush1.msra.mxu0 0.0
    %328 = vmatprep.subr.mxu0 0.0
    %329 = vmatpush1.msra.mxu0 0.0
    %330 = vmatprep.subr.mxu0 0.0
    %331 = vmatpush1.msra.mxu0 0.0
    %332 = vmatprep.subr.mxu0 0.0
    %333 = vmatpush1.msra.mxu0 0.0
    %334 = vmatprep.subr.mxu0 0.0
    %335 = vmatpush1.msra.mxu0 0.0
    %336 = vmatprep.subr.mxu0 0.0
    %337 = vmatpush1.msra.mxu0 0.0
    %338 = vmatprep.subr.mxu0 0.0
    %339 = vmatpush1.msra.mxu0 0.0
    %340 = vmatprep.subr.mxu0 0.0
    %341 = vmatpush1.msra.mxu0 0.0
    %342 = vmatprep.subr.mxu0 0.0
    %343 = vmatpush1.msra.mxu0 0.0
    %344 = vmatprep.subr.mxu0 0.0
    %345 = vmatpush1.msra.mxu0 0.0
    %346 = vmatprep.subr.mxu0 0.0
    %347 = vmatpush1.msra.mxu0 0.0
    %348 = vmatprep.subr.mxu0 0.0
    %349 = vmatpush1.msra.mxu0 0.0
    %350 = vmatprep.subr.mxu0 0.0
    %351 = vmatpush1.msra.mxu0 0.0
    %352 = vmatprep.subr.mxu0 0.0
    %353 = vmatpush1.msra.mxu0 0.0
    %354 = vmatprep.subr.mxu0 0.0
    %355 = vmatpush1.msra.mxu0 0.0
    %356 = vmatprep.subr.mxu0 0.0
    %357 = vmatpush1.msra.mxu0 0.0
    %358 = vmatprep.subr.mxu0 0.0
    %359 = vmatpush1.msra.mxu0 0.0
    %360 = vmatprep.subr.mxu0 0.0
    %361 = vmatpush1.msra.mxu0 0.0
    %362 = vmatprep.subr.mxu0 0.0
    %363 = vmatpush1.msra.mxu0 0.0
    %364 = vmatprep.subr.mxu0 0.0
    %365 = vmatpush1.msra.mxu0 0.0
    %366 = vmatprep.subr.mxu0 0.0
    %367 = vmatpush1.msra.mxu0 0.0
    %368 = vmatprep.subr.mxu0 0.0
    %369 = vmatpush1.msra.mxu0 0.0
    %370 = vmatprep.subr.mxu0 0.0
    %371 = vmatpush1.msra.mxu0 0.0
    %372 = vmatprep.subr.mxu0 0.0
    %373 = vmatpush1.msra.mxu0 0.0
    %374 = vmatprep.subr.mxu0 0.0
    %375 = vmatpush1.msra.mxu0 0.0
    %376 = vmatprep.subr.mxu0 0.0
    %377 = vmatpush1.msra.mxu0 0.0
    %378 = vmatprep.mubr.f32.mxu0 0.0
    %v379 = vand.u32 %v100, 4294901760
    %v380 = vsub.f32 %v100, %v379
    %381 = vmatmul.mubr.f32.gmra.mrb[0].mxu0 %v380
    %v382 = vpop.f32.mrb[0].mxu0
    %v383 = vadd.f32 %v294, %v382
    %v384 = vpop.f32.mrb[0].mxu0
    %v385 = vadd.f32 %v296, %v384
    %386 = vdwg.mxu0
    %v387 = vand.u32 %v91, 4294901760
    %388 = vmatprep.subr.mxu0 %v387
    %v389 = vand.u32 %v90, 4294901760
    %390 = vmatpush1.msra.mxu0 %v389
    %v391 = vand.u32 %v93, 4294901760
    %392 = vmatprep.subr.mxu0 %v391
    %v393 = vand.u32 %v92, 4294901760
    %394 = vmatpush1.msra.mxu0 %v393
    %v395 = vand.u32 %v95, 4294901760
    %396 = vmatprep.subr.mxu0 %v395
    %v397 = vand.u32 %v94, 4294901760
    %398 = vmatpush1.msra.mxu0 %v397
    %v399 = vand.u32 %v97, 4294901760
    %400 = vmatprep.subr.mxu0 %v399
    %v401 = vand.u32 %v96, 4294901760
    %402 = vmatpush1.msra.mxu0 %v401
    %403 = vmatprep.subr.mxu0 0.0
    %404 = vmatpush1.msra.mxu0 0.0
    %405 = vmatprep.subr.mxu0 0.0
    %406 = vmatpush1.msra.mxu0 0.0
    %407 = vmatprep.subr.mxu0 0.0
    %408 = vmatpush1.msra.mxu0 0.0
    %409 = vmatprep.subr.mxu0 0.0
    %410 = vmatpush1.msra.mxu0 0.0
    %411 = vmatprep.subr.mxu0 0.0
    %412 = vmatpush1.msra.mxu0 0.0
    %413 = vmatprep.subr.mxu0 0.0
    %414 = vmatpush1.msra.mxu0 0.0
    %415 = vmatprep.subr.mxu0 0.0
    %416 = vmatpush1.msra.mxu0 0.0
    %417 = vmatprep.subr.mxu0 0.0
    %418 = vmatpush1.msra.mxu0 0.0
    %419 = vmatprep.subr.mxu0 0.0
    %420 = vmatpush1.msra.mxu0 0.0
    %421 = vmatprep.subr.mxu0 0.0
    %422 = vmatpush1.msra.mxu0 0.0
    %423 = vmatprep.subr.mxu0 0.0
    %424 = vmatpush1.msra.mxu0 0.0
    %425 = vmatprep.subr.mxu0 0.0
    %426 = vmatpush1.msra.mxu0 0.0
    %427 = vmatprep.subr.mxu0 0.0
    %428 = vmatpush1.msra.mxu0 0.0
    %429 = vmatprep.subr.mxu0 0.0
    %430 = vmatpush1.msra.mxu0 0.0
    %431 = vmatprep.subr.mxu0 0.0
    %432 = vmatpush1.msra.mxu0 0.0
    %433 = vmatprep.subr.mxu0 0.0
    %434 = vmatpush1.msra.mxu0 0.0
    %435 = vmatprep.subr.mxu0 0.0
    %436 = vmatpush1.msra.mxu0 0.0
    %437 = vmatprep.subr.mxu0 0.0
    %438 = vmatpush1.msra.mxu0 0.0
    %439 = vmatprep.subr.mxu0 0.0
    %440 = vmatpush1.msra.mxu0 0.0
    %441 = vmatprep.subr.mxu0 0.0
    %442 = vmatpush1.msra.mxu0 0.0
    %443 = vmatprep.subr.mxu0 0.0
    %444 = vmatpush1.msra.mxu0 0.0
    %445 = vmatprep.subr.mxu0 0.0
    %446 = vmatpush1.msra.mxu0 0.0
    %447 = vmatprep.subr.mxu0 0.0
    %448 = vmatpush1.msra.mxu0 0.0
    %449 = vmatprep.subr.mxu0 0.0
    %450 = vmatpush1.msra.mxu0 0.0
    %451 = vmatprep.subr.mxu0 0.0
    %452 = vmatpush1.msra.mxu0 0.0
    %453 = vmatprep.subr.mxu0 0.0
    %454 = vmatpush1.msra.mxu0 0.0
    %455 = vmatprep.subr.mxu0 0.0
    %456 = vmatpush1.msra.mxu0 0.0
    %457 = vmatprep.subr.mxu0 0.0
    %458 = vmatpush1.msra.mxu0 0.0
    %459 = vmatprep.mubr.f32.mxu0 0.0
    %v460 = vand.u32 %v100, 4294901760
    %v461 = vsub.f32 %v100, %v460
    %v462 = vand.u32 %v461, 4294901760
    %463 = vmatmul.mubr.f32.gmra.mrb[0].mxu0 %v462
    %v464 = vpop.f32.mrb[0].mxu0
    %v465 = vadd.f32 %v383, %v464
    %v466 = vpop.f32.mrb[0].mxu0
    %v467 = vadd.f32 %v385, %v466
    %468 = vdwg.mxu0
    %v469 = vand.u32 %v91, 4294901760
    %v470 = vsub.f32 %v91, %v469
    %v471 = vand.u32 %v470, 4294901760
    %472 = vmatprep.subr.mxu0 %v471
    %v473 = vand.u32 %v90, 4294901760
    %v474 = vsub.f32 %v90, %v473
    %v475 = vand.u32 %v474, 4294901760
    %476 = vmatpush1.msra.mxu0 %v475
    %v477 = vand.u32 %v93, 4294901760
    %v478 = vsub.f32 %v93, %v477
    %v479 = vand.u32 %v478, 4294901760
    %480 = vmatprep.subr.mxu0 %v479
    %v481 = vand.u32 %v92, 4294901760
    %v482 = vsub.f32 %v92, %v481
    %v483 = vand.u32 %v482, 4294901760
    %484 = vmatpush1.msra.mxu0 %v483
    %v485 = vand.u32 %v95, 4294901760
    %v486 = vsub.f32 %v95, %v485
    %v487 = vand.u32 %v486, 4294901760
    %488 = vmatprep.subr.mxu0 %v487
    %v489 = vand.u32 %v94, 4294901760
    %v490 = vsub.f32 %v94, %v489
    %v491 = vand.u32 %v490, 4294901760
    %492 = vmatpush1.msra.mxu0 %v491
    %v493 = vand.u32 %v97, 4294901760
    %v494 = vsub.f32 %v97, %v493
    %v495 = vand.u32 %v494, 4294901760
    %496 = vmatprep.subr.mxu0 %v495
    %v497 = vand.u32 %v96, 4294901760
    %v498 = vsub.f32 %v96, %v497
    %v499 = vand.u32 %v498, 4294901760
    %500 = vmatpush1.msra.mxu0 %v499
    %501 = vmatprep.subr.mxu0 0.0
    %502 = vmatpush1.msra.mxu0 0.0
    %503 = vmatprep.subr.mxu0 0.0
    %504 = vmatpush1.msra.mxu0 0.0
    %505 = vmatprep.subr.mxu0 0.0
    %506 = vmatpush1.msra.mxu0 0.0
    %507 = vmatprep.subr.mxu0 0.0
    %508 = vmatpush1.msra.mxu0 0.0
    %509 = vmatprep.subr.mxu0 0.0
    %510 = vmatpush1.msra.mxu0 0.0
    %511 = vmatprep.subr.mxu0 0.0
    %512 = vmatpush1.msra.mxu0 0.0
    %513 = vmatprep.subr.mxu0 0.0
    %514 = vmatpush1.msra.mxu0 0.0
    %515 = vmatprep.subr.mxu0 0.0
    %516 = vmatpush1.msra.mxu0 0.0
    %517 = vmatprep.subr.mxu0 0.0
    %518 = vmatpush1.msra.mxu0 0.0
    %519 = vmatprep.subr.mxu0 0.0
    %520 = vmatpush1.msra.mxu0 0.0
    %521 = vmatprep.subr.mxu0 0.0
    %522 = vmatpush1.msra.mxu0 0.0
    %523 = vmatprep.subr.mxu0 0.0
    %524 = vmatpush1.msra.mxu0 0.0
    %525 = vmatprep.subr.mxu0 0.0
    %526 = vmatpush1.msra.mxu0 0.0
    %527 = vmatprep.subr.mxu0 0.0
    %528 = vmatpush1.msra.mxu0 0.0
    %529 = vmatprep.subr.mxu0 0.0
    %530 = vmatpush1.msra.mxu0 0.0
    %531 = vmatprep.subr.mxu0 0.0
    %532 = vmatpush1.msra.mxu0 0.0
    %533 = vmatprep.subr.mxu0 0.0
    %534 = vmatpush1.msra.mxu0 0.0
    %535 = vmatprep.subr.mxu0 0.0
    %536 = vmatpush1.msra.mxu0 0.0
    %537 = vmatprep.subr.mxu0 0.0
    %538 = vmatpush1.msra.mxu0 0.0
    %539 = vmatprep.subr.mxu0 0.0
    %540 = vmatpush1.msra.mxu0 0.0
    %541 = vmatprep.subr.mxu0 0.0
    %542 = vmatpush1.msra.mxu0 0.0
    %543 = vmatprep.subr.mxu0 0.0
    %544 = vmatpush1.msra.mxu0 0.0
    %545 = vmatprep.subr.mxu0 0.0
    %546 = vmatpush1.msra.mxu0 0.0
    %547 = vmatprep.subr.mxu0 0.0
    %548 = vmatpush1.msra.mxu0 0.0
    %549 = vmatprep.subr.mxu0 0.0
    %550 = vmatpush1.msra.mxu0 0.0
    %551 = vmatprep.subr.mxu0 0.0
    %552 = vmatpush1.msra.mxu0 0.0
    %553 = vmatprep.subr.mxu0 0.0
    %554 = vmatpush1.msra.mxu0 0.0
    %555 = vmatprep.subr.mxu0 0.0
    %556 = vmatpush1.msra.mxu0 0.0
    %557 = vmatprep.mubr.f32.mxu0 0.0
    %v558 = vand.u32 %v100, 4294901760
    %559 = vmatmul.mubr.f32.gmra.mrb[0].mxu0 %v558
    %v560 = vpop.f32.mrb[0].mxu0
    %v561 = vadd.f32 %v465, %v560
    %v562 = vpop.f32.mrb[0].mxu0
    %v563 = vadd.f32 %v467, %v562
    %564 = vdwg.mxu0
    %v565 = vand.u32 %v91, 4294901760
    %566 = vmatprep.subr.mxu0 %v565
    %v567 = vand.u32 %v90, 4294901760
    %568 = vmatpush1.msra.mxu0 %v567
    %v569 = vand.u32 %v93, 4294901760
    %570 = vmatprep.subr.mxu0 %v569
    %v571 = vand.u32 %v92, 4294901760
    %572 = vmatpush1.msra.mxu0 %v571
    %v573 = vand.u32 %v95, 4294901760
    %574 = vmatprep.subr.mxu0 %v573
    %v575 = vand.u32 %v94, 4294901760
    %576 = vmatpush1.msra.mxu0 %v575
    %v577 = vand.u32 %v97, 4294901760
    %578 = vmatprep.subr.mxu0 %v577
    %v579 = vand.u32 %v96, 4294901760
    %580 = vmatpush1.msra.mxu0 %v579
    %581 = vmatprep.subr.mxu0 0.0
    %582 = vmatpush1.msra.mxu0 0.0
    %583 = vmatprep.subr.mxu0 0.0
    %584 = vmatpush1.msra.mxu0 0.0
    %585 = vmatprep.subr.mxu0 0.0
    %586 = vmatpush1.msra.mxu0 0.0
    %587 = vmatprep.subr.mxu0 0.0
    %588 = vmatpush1.msra.mxu0 0.0
    %589 = vmatprep.subr.mxu0 0.0
    %590 = vmatpush1.msra.mxu0 0.0
    %591 = vmatprep.subr.mxu0 0.0
    %592 = vmatpush1.msra.mxu0 0.0
    %593 = vmatprep.subr.mxu0 0.0
    %594 = vmatpush1.msra.mxu0 0.0
    %595 = vmatprep.subr.mxu0 0.0
    %596 = vmatpush1.msra.mxu0 0.0
    %597 = vmatprep.subr.mxu0 0.0
    %598 = vmatpush1.msra.mxu0 0.0
    %599 = vmatprep.subr.mxu0 0.0
    %600 = vmatpush1.msra.mxu0 0.0
    %601 = vmatprep.subr.mxu0 0.0
    %602 = vmatpush1.msra.mxu0 0.0
    %603 = vmatprep.subr.mxu0 0.0
    %604 = vmatpush1.msra.mxu0 0.0
    %605 = vmatprep.subr.mxu0 0.0
    %606 = vmatpush1.msra.mxu0 0.0
    %607 = vmatprep.subr.mxu0 0.0
    %608 = vmatpush1.msra.mxu0 0.0
    %609 = vmatprep.subr.mxu0 0.0
    %610 = vmatpush1.msra.mxu0 0.0
    %611 = vmatprep.subr.mxu0 0.0
    %612 = vmatpush1.msra.mxu0 0.0
    %613 = vmatprep.subr.mxu0 0.0
    %614 = vmatpush1.msra.mxu0 0.0
    %615 = vmatprep.subr.mxu0 0.0
    %616 = vmatpush1.msra.mxu0 0.0
    %617 = vmatprep.subr.mxu0 0.0
    %618 = vmatpush1.msra.mxu0 0.0
    %619 = vmatprep.subr.mxu0 0.0
    %620 = vmatpush1.msra.mxu0 0.0
    %621 = vmatprep.subr.mxu0 0.0
    %622 = vmatpush1.msra.mxu0 0.0
    %623 = vmatprep.subr.mxu0 0.0
    %624 = vmatpush1.msra.mxu0 0.0
    %625 = vmatprep.subr.mxu0 0.0
    %626 = vmatpush1.msra.mxu0 0.0
    %627 = vmatprep.subr.mxu0 0.0
    %628 = vmatpush1.msra.mxu0 0.0
    %629 = vmatprep.subr.mxu0 0.0
    %630 = vmatpush1.msra.mxu0 0.0
    %631 = vmatprep.subr.mxu0 0.0
    %632 = vmatpush1.msra.mxu0 0.0
    %633 = vmatprep.subr.mxu0 0.0
    %634 = vmatpush1.msra.mxu0 0.0
    %635 = vmatprep.subr.mxu0 0.0
    %636 = vmatpush1.msra.mxu0 0.0
    %637 = vmatprep.mubr.f32.mxu0 0.0
    %v638 = vand.u32 %v100, 4294901760
    %639 = vmatmul.mubr.f32.gmra.mrb[0].mxu0 %v638
    %v640 = vpop.f32.mrb[0].mxu0
    %v641 = vadd.f32 %v561, %v640
    %v642 = vpop.f32.mrb[0].mxu0
    %v643 = vadd.f32 %v563, %v642
    %644 = vdwg.mxu0
    %v645 = vld [vmem:[#allocation8] sm:$0xff]
    %v646 = vld [vmem:[#allocation8 + $0x8] sm:$0xff]
    %v647 = vld [vmem:[#allocation8 + $0x10] sm:$0xff]
    %v648 = vld [vmem:[#allocation8 + $0x18] sm:$0xff]
    %vm649 = vcmask 130048
    %v651 = vsel %vm649, %v89, 0
    %v653 = vand.u32 %v646, 4294901760
    %654 = vmatprep.subr.mxu0 %v653
    %v655 = vand.u32 %v645, 4294901760
    %656 = vmatpush1.msra.mxu0 %v655
    %v657 = vand.u32 %v648, 4294901760
    %658 = vmatprep.subr.mxu0 %v657
    %v659 = vand.u32 %v647, 4294901760
    %660 = vmatpush1.msra.mxu0 %v659
    %661 = vmatprep.subr.mxu0 0.0
    %662 = vmatpush1.msra.mxu0 0.0
    %663 = vmatprep.subr.mxu0 0.0
    %664 = vmatpush1.msra.mxu0 0.0
    %665 = vmatprep.subr.mxu0 0.0
    %666 = vmatpush1.msra.mxu0 0.0
    %667 = vmatprep.subr.mxu0 0.0
    %668 = vmatpush1.msra.mxu0 0.0
    %669 = vmatprep.subr.mxu0 0.0
    %670 = vmatpush1.msra.mxu0 0.0
    %671 = vmatprep.subr.mxu0 0.0
    %672 = vmatpush1.msra.mxu0 0.0
    %673 = vmatprep.subr.mxu0 0.0
    %674 = vmatpush1.msra.mxu0 0.0
    %675 = vmatprep.subr.mxu0 0.0
    %676 = vmatpush1.msra.mxu0 0.0
    %677 = vmatprep.subr.mxu0 0.0
    %678 = vmatpush1.msra.mxu0 0.0
    %679 = vmatprep.subr.mxu0 0.0
    %680 = vmatpush1.msra.mxu0 0.0
    %681 = vmatprep.subr.mxu0 0.0
    %682 = vmatpush1.msra.mxu0 0.0
    %683 = vmatprep.subr.mxu0 0.0
    %684 = vmatpush1.msra.mxu0 0.0
    %685 = vmatprep.subr.mxu0 0.0
    %686 = vmatpush1.msra.mxu0 0.0
    %687 = vmatprep.subr.mxu0 0.0
    %688 = vmatpush1.msra.mxu0 0.0
    %689 = vmatprep.subr.mxu0 0.0
    %690 = vmatpush1.msra.mxu0 0.0
    %691 = vmatprep.subr.mxu0 0.0
    %692 = vmatpush1.msra.mxu0 0.0
    %693 = vmatprep.subr.mxu0 0.0
    %694 = vmatpush1.msra.mxu0 0.0
    %695 = vmatprep.subr.mxu0 0.0
    %696 = vmatpush1.msra.mxu0 0.0
    %697 = vmatprep.subr.mxu0 0.0
    %698 = vmatpush1.msra.mxu0 0.0
    %699 = vmatprep.subr.mxu0 0.0
    %700 = vmatpush1.msra.mxu0 0.0
    %701 = vmatprep.subr.mxu0 0.0
    %702 = vmatpush1.msra.mxu0 0.0
    %703 = vmatprep.subr.mxu0 0.0
    %704 = vmatpush1.msra.mxu0 0.0
    %705 = vmatprep.subr.mxu0 0.0
    %706 = vmatpush1.msra.mxu0 0.0
    %707 = vmatprep.subr.mxu0 0.0
    %708 = vmatpush1.msra.mxu0 0.0
    %709 = vmatprep.subr.mxu0 0.0
    %710 = vmatpush1.msra.mxu0 0.0
    %711 = vmatprep.subr.mxu0 0.0
    %712 = vmatpush1.msra.mxu0 0.0
    %713 = vmatprep.subr.mxu0 0.0
    %714 = vmatpush1.msra.mxu0 0.0
    %715 = vmatprep.subr.mxu0 0.0
    %716 = vmatpush1.msra.mxu0 0.0
    %717 = vmatprep.subr.mxu0 0.0
    %718 = vmatpush1.msra.mxu0 0.0
    %719 = vmatprep.subr.mxu0 0.0
    %720 = vmatpush1.msra.mxu0 0.0
    %721 = vmatprep.mubr.f32.mxu0 0.0
    %v722 = vand.u32 %v651, 4294901760
    %v723 = vsub.f32 %v651, %v722
    %v724 = vand.u32 %v723, 4294901760
    %v725 = vsub.f32 %v723, %v724
    %v726 = vand.u32 %v725, 4294901760
    %727 = vmatmul.mubr.f32.gmra.mrb[0].mxu0 %v726
    %v728 = vpop.f32.mrb[0].mxu0
    %v729 = vadd.f32 0.0, %v728
    %v730 = vpop.f32.mrb[0].mxu0
    %v731 = vadd.f32 0.0, %v730
    %732 = vdwg.mxu0
    %v733 = vand.u32 %v646, 4294901760
    %v734 = vsub.f32 %v646, %v733
    %v735 = vand.u32 %v734, 4294901760
    %v736 = vsub.f32 %v734, %v735
    %v737 = vand.u32 %v736, 4294901760
    %738 = vmatprep.subr.mxu0 %v737
    %v739 = vand.u32 %v645, 4294901760
    %v740 = vsub.f32 %v645, %v739
    %v741 = vand.u32 %v740, 4294901760
    %v742 = vsub.f32 %v740, %v741
    %v743 = vand.u32 %v742, 4294901760
    %744 = vmatpush1.msra.mxu0 %v743
    %v745 = vand.u32 %v648, 4294901760
    %v746 = vsub.f32 %v648, %v745
    %v747 = vand.u32 %v746, 4294901760
    %v748 = vsub.f32 %v746, %v747
    %v749 = vand.u32 %v748, 4294901760
    %750 = vmatprep.subr.mxu0 %v749
    %v751 = vand.u32 %v647, 4294901760
    %v752 = vsub.f32 %v647, %v751
    %v753 = vand.u32 %v752, 4294901760
    %v754 = vsub.f32 %v752, %v753
    %v755 = vand.u32 %v754, 4294901760
    %756 = vmatpush1.msra.mxu0 %v755
    %757 = vmatprep.subr.mxu0 0.0
    %758 = vmatpush1.msra.mxu0 0.0
    %759 = vmatprep.subr.mxu0 0.0
    %760 = vmatpush1.msra.mxu0 0.0
    %761 = vmatprep.subr.mxu0 0.0
    %762 = vmatpush1.msra.mxu0 0.0
    %763 = vmatprep.subr.mxu0 0.0
    %764 = vmatpush1.msra.mxu0 0.0
    %765 = vmatprep.subr.mxu0 0.0
    %766 = vmatpush1.msra.mxu0 0.0
    %767 = vmatprep.subr.mxu0 0.0
    %768 = vmatpush1.msra.mxu0 0.0
    %769 = vmatprep.subr.mxu0 0.0
    %770 = vmatpush1.msra.mxu0 0.0
    %771 = vmatprep.subr.mxu0 0.0
    %772 = vmatpush1.msra.mxu0 0.0
    %773 = vmatprep.subr.mxu0 0.0
    %774 = vmatpush1.msra.mxu0 0.0
    %775 = vmatprep.subr.mxu0 0.0
    %776 = vmatpush1.msra.mxu0 0.0
    %777 = vmatprep.subr.mxu0 0.0
    %778 = vmatpush1.msra.mxu0 0.0
    %779 = vmatprep.subr.mxu0 0.0
    %780 = vmatpush1.msra.mxu0 0.0
    %781 = vmatprep.subr.mxu0 0.0
    %782 = vmatpush1.msra.mxu0 0.0
    %783 = vmatprep.subr.mxu0 0.0
    %784 = vmatpush1.msra.mxu0 0.0
    %785 = vmatprep.subr.mxu0 0.0
    %786 = vmatpush1.msra.mxu0 0.0
    %787 = vmatprep.subr.mxu0 0.0
    %788 = vmatpush1.msra.mxu0 0.0
    %789 = vmatprep.subr.mxu0 0.0
    %790 = vmatpush1.msra.mxu0 0.0
    %791 = vmatprep.subr.mxu0 0.0
    %792 = vmatpush1.msra.mxu0 0.0
    %793 = vmatprep.subr.mxu0 0.0
    %794 = vmatpush1.msra.mxu0 0.0
    %795 = vmatprep.subr.mxu0 0.0
    %796 = vmatpush1.msra.mxu0 0.0
    %797 = vmatprep.subr.mxu0 0.0
    %798 = vmatpush1.msra.mxu0 0.0
    %799 = vmatprep.subr.mxu0 0.0
    %800 = vmatpush1.msra.mxu0 0.0
    %801 = vmatprep.subr.mxu0 0.0
    %802 = vmatpush1.msra.mxu0 0.0
    %803 = vmatprep.subr.mxu0 0.0
    %804 = vmatpush1.msra.mxu0 0.0
    %805 = vmatprep.subr.mxu0 0.0
    %806 = vmatpush1.msra.mxu0 0.0
    %807 = vmatprep.subr.mxu0 0.0
    %808 = vmatpush1.msra.mxu0 0.0
    %809 = vmatprep.subr.mxu0 0.0
    %810 = vmatpush1.msra.mxu0 0.0
    %811 = vmatprep.subr.mxu0 0.0
    %812 = vmatpush1.msra.mxu0 0.0
    %813 = vmatprep.subr.mxu0 0.0
    %814 = vmatpush1.msra.mxu0 0.0
    %815 = vmatprep.subr.mxu0 0.0
    %816 = vmatpush1.msra.mxu0 0.0
    %817 = vmatprep.mubr.f32.mxu0 0.0
    %v818 = vand.u32 %v651, 4294901760
    %819 = vmatmul.mubr.f32.gmra.mrb[0].mxu0 %v818
    %v820 = vpop.f32.mrb[0].mxu0
    %v821 = vadd.f32 %v729, %v820
    %v822 = vpop.f32.mrb[0].mxu0
    %v823 = vadd.f32 %v731, %v822
    %824 = vdwg.mxu0
    %v825 = vand.u32 %v646, 4294901760
    %v826 = vsub.f32 %v646, %v825
    %827 = vmatprep.subr.mxu0 %v826
    %v828 = vand.u32 %v645, 4294901760
    %v829 = vsub.f32 %v645, %v828
    %830 = vmatpush1.msra.mxu0 %v829
    %v831 = vand.u32 %v648, 4294901760
    %v832 = vsub.f32 %v648, %v831
    %833 = vmatprep.subr.mxu0 %v832
    %v834 = vand.u32 %v647, 4294901760
    %v835 = vsub.f32 %v647, %v834
    %836 = vmatpush1.msra.mxu0 %v835
    %837 = vmatprep.subr.mxu0 0.0
    %838 = vmatpush1.msra.mxu0 0.0
    %839 = vmatprep.subr.mxu0 0.0
    %840 = vmatpush1.msra.mxu0 0.0
    %841 = vmatprep.subr.mxu0 0.0
    %842 = vmatpush1.msra.mxu0 0.0
    %843 = vmatprep.subr.mxu0 0.0
    %844 = vmatpush1.msra.mxu0 0.0
    %845 = vmatprep.subr.mxu0 0.0
    %846 = vmatpush1.msra.mxu0 0.0
    %847 = vmatprep.subr.mxu0 0.0
    %848 = vmatpush1.msra.mxu0 0.0
    %849 = vmatprep.subr.mxu0 0.0
    %850 = vmatpush1.msra.mxu0 0.0
    %851 = vmatprep.subr.mxu0 0.0
    %852 = vmatpush1.msra.mxu0 0.0
    %853 = vmatprep.subr.mxu0 0.0
    %854 = vmatpush1.msra.mxu0 0.0
    %855 = vmatprep.subr.mxu0 0.0
    %856 = vmatpush1.msra.mxu0 0.0
    %857 = vmatprep.subr.mxu0 0.0
    %858 = vmatpush1.msra.mxu0 0.0
    %859 = vmatprep.subr.mxu0 0.0
    %860 = vmatpush1.msra.mxu0 0.0
    %861 = vmatprep.subr.mxu0 0.0
    %862 = vmatpush1.msra.mxu0 0.0
    %863 = vmatprep.subr.mxu0 0.0
    %864 = vmatpush1.msra.mxu0 0.0
    %865 = vmatprep.subr.mxu0 0.0
    %866 = vmatpush1.msra.mxu0 0.0
    %867 = vmatprep.subr.mxu0 0.0
    %868 = vmatpush1.msra.mxu0 0.0
    %869 = vmatprep.subr.mxu0 0.0
    %870 = vmatpush1.msra.mxu0 0.0
    %871 = vmatprep.subr.mxu0 0.0
    %872 = vmatpush1.msra.mxu0 0.0
    %873 = vmatprep.subr.mxu0 0.0
    %874 = vmatpush1.msra.mxu0 0.0
    %875 = vmatprep.subr.mxu0 0.0
    %876 = vmatpush1.msra.mxu0 0.0
    %877 = vmatprep.subr.mxu0 0.0
    %878 = vmatpush1.msra.mxu0 0.0
    %879 = vmatprep.subr.mxu0 0.0
    %880 = vmatpush1.msra.mxu0 0.0
    %881 = vmatprep.subr.mxu0 0.0
    %882 = vmatpush1.msra.mxu0 0.0
    %883 = vmatprep.subr.mxu0 0.0
    %884 = vmatpush1.msra.mxu0 0.0
    %885 = vmatprep.subr.mxu0 0.0
    %886 = vmatpush1.msra.mxu0 0.0
    %887 = vmatprep.subr.mxu0 0.0
    %888 = vmatpush1.msra.mxu0 0.0
    %889 = vmatprep.subr.mxu0 0.0
    %890 = vmatpush1.msra.mxu0 0.0
    %891 = vmatprep.subr.mxu0 0.0
    %892 = vmatpush1.msra.mxu0 0.0
    %893 = vmatprep.subr.mxu0 0.0
    %894 = vmatpush1.msra.mxu0 0.0
    %895 = vmatprep.subr.mxu0 0.0
    %896 = vmatpush1.msra.mxu0 0.0
    %897 = vmatprep.mubr.f32.mxu0 0.0
    %v898 = vand.u32 %v651, 4294901760
    %v899 = vsub.f32 %v651, %v898
    %900 = vmatmul.mubr.f32.gmra.mrb[0].mxu0 %v899
    %v901 = vpop.f32.mrb[0].mxu0
    %v902 = vadd.f32 %v821, %v901
    %v903 = vpop.f32.mrb[0].mxu0
    %v904 = vadd.f32 %v823, %v903
    %905 = vdwg.mxu0
    %v906 = vand.u32 %v646, 4294901760
    %907 = vmatprep.subr.mxu0 %v906
    %v908 = vand.u32 %v645, 4294901760
    %909 = vmatpush1.msra.mxu0 %v908
    %v910 = vand.u32 %v648, 4294901760
    %911 = vmatprep.subr.mxu0 %v910
    %v912 = vand.u32 %v647, 4294901760
    %913 = vmatpush1.msra.mxu0 %v912
    %914 = vmatprep.subr.mxu0 0.0
    %915 = vmatpush1.msra.mxu0 0.0
    %916 = vmatprep.subr.mxu0 0.0
    %917 = vmatpush1.msra.mxu0 0.0
    %918 = vmatprep.subr.mxu0 0.0
    %919 = vmatpush1.msra.mxu0 0.0
    %920 = vmatprep.subr.mxu0 0.0
    %921 = vmatpush1.msra.mxu0 0.0
    %922 = vmatprep.subr.mxu0 0.0
    %923 = vmatpush1.msra.mxu0 0.0
    %924 = vmatprep.subr.mxu0 0.0
    %925 = vmatpush1.msra.mxu0 0.0
    %926 = vmatprep.subr.mxu0 0.0
    %927 = vmatpush1.msra.mxu0 0.0
    %928 = vmatprep.subr.mxu0 0.0
    %929 = vmatpush1.msra.mxu0 0.0
    %930 = vmatprep.subr.mxu0 0.0
    %931 = vmatpush1.msra.mxu0 0.0
    %932 = vmatprep.subr.mxu0 0.0
    %933 = vmatpush1.msra.mxu0 0.0
    %934 = vmatprep.subr.mxu0 0.0
    %935 = vmatpush1.msra.mxu0 0.0
    %936 = vmatprep.subr.mxu0 0.0
    %937 = vmatpush1.msra.mxu0 0.0
    %938 = vmatprep.subr.mxu0 0.0
    %939 = vmatpush1.msra.mxu0 0.0
    %940 = vmatprep.subr.mxu0 0.0
    %941 = vmatpush1.msra.mxu0 0.0
    %942 = vmatprep.subr.mxu0 0.0
    %943 = vmatpush1.msra.mxu0 0.0
    %944 = vmatprep.subr.mxu0 0.0
    %945 = vmatpush1.msra.mxu0 0.0
    %946 = vmatprep.subr.mxu0 0.0
    %947 = vmatpush1.msra.mxu0 0.0
    %948 = vmatprep.subr.mxu0 0.0
    %949 = vmatpush1.msra.mxu0 0.0
    %950 = vmatprep.subr.mxu0 0.0
    %951 = vmatpush1.msra.mxu0 0.0
    %952 = vmatprep.subr.mxu0 0.0
    %953 = vmatpush1.msra.mxu0 0.0
    %954 = vmatprep.subr.mxu0 0.0
    %955 = vmatpush1.msra.mxu0 0.0
    %956 = vmatprep.subr.mxu0 0.0
    %957 = vmatpush1.msra.mxu0 0.0
    %958 = vmatprep.subr.mxu0 0.0
    %959 = vmatpush1.msra.mxu0 0.0
    %960 = vmatprep.subr.mxu0 0.0
    %961 = vmatpush1.msra.mxu0 0.0
    %962 = vmatprep.subr.mxu0 0.0
    %963 = vmatpush1.msra.mxu0 0.0
    %964 = vmatprep.subr.mxu0 0.0
    %965 = vmatpush1.msra.mxu0 0.0
    %966 = vmatprep.subr.mxu0 0.0
    %967 = vmatpush1.msra.mxu0 0.0
    %968 = vmatprep.subr.mxu0 0.0
    %969 = vmatpush1.msra.mxu0 0.0
    %970 = vmatprep.subr.mxu0 0.0
    %971 = vmatpush1.msra.mxu0 0.0
    %972 = vmatprep.subr.mxu0 0.0
    %973 = vmatpush1.msra.mxu0 0.0
    %974 = vmatprep.mubr.f32.mxu0 0.0
    %v975 = vand.u32 %v651, 4294901760
    %v976 = vsub.f32 %v651, %v975
    %v977 = vand.u32 %v976, 4294901760
    %978 = vmatmul.mubr.f32.gmra.mrb[0].mxu0 %v977
    %v979 = vpop.f32.mrb[0].mxu0
    %v980 = vadd.f32 %v902, %v979
    %v981 = vpop.f32.mrb[0].mxu0
    %v982 = vadd.f32 %v904, %v981
    %983 = vdwg.mxu0
    %v984 = vand.u32 %v646, 4294901760
    %v985 = vsub.f32 %v646, %v984
    %v986 = vand.u32 %v985, 4294901760
    %987 = vmatprep.subr.mxu0 %v986
    %v988 = vand.u32 %v645, 4294901760
    %v989 = vsub.f32 %v645, %v988
    %v990 = vand.u32 %v989, 4294901760
    %991 = vmatpush1.msra.mxu0 %v990
    %v992 = vand.u32 %v648, 4294901760
    %v993 = vsub.f32 %v648, %v992
    %v994 = vand.u32 %v993, 4294901760
    %995 = vmatprep.subr.mxu0 %v994
    %v996 = vand.u32 %v647, 4294901760
    %v997 = vsub.f32 %v647, %v996
    %v998 = vand.u32 %v997, 4294901760
    %999 = vmatpush1.msra.mxu0 %v998
    %1000 = vmatprep.subr.mxu0 0.0
    %1001 = vmatpush1.msra.mxu0 0.0
    %1002 = vmatprep.subr.mxu0 0.0
    %1003 = vmatpush1.msra.mxu0 0.0
    %1004 = vmatprep.subr.mxu0 0.0
    %1005 = vmatpush1.msra.mxu0 0.0
    %1006 = vmatprep.subr.mxu0 0.0
    %1007 = vmatpush1.msra.mxu0 0.0
    %1008 = vmatprep.subr.mxu0 0.0
    %1009 = vmatpush1.msra.mxu0 0.0
    %1010 = vmatprep.subr.mxu0 0.0
    %1011 = vmatpush1.msra.mxu0 0.0
    %1012 = vmatprep.subr.mxu0 0.0
    %1013 = vmatpush1.msra.mxu0 0.0
    %1014 = vmatprep.subr.mxu0 0.0
    %1015 = vmatpush1.msra.mxu0 0.0
    %1016 = vmatprep.subr.mxu0 0.0
    %1017 = vmatpush1.msra.mxu0 0.0
    %1018 = vmatprep.subr.mxu0 0.0
    %1019 = vmatpush1.msra.mxu0 0.0
    %1020 = vmatprep.subr.mxu0 0.0
    %1021 = vmatpush1.msra.mxu0 0.0
    %1022 = vmatprep.subr.mxu0 0.0
    %1023 = vmatpush1.msra.mxu0 0.0
    %1024 = vmatprep.subr.mxu0 0.0
    %1025 = vmatpush1.msra.mxu0 0.0
    %1026 = vmatprep.subr.mxu0 0.0
    %1027 = vmatpush1.msra.mxu0 0.0
    %1028 = vmatprep.subr.mxu0 0.0
    %1029 = vmatpush1.msra.mxu0 0.0
    %1030 = vmatprep.subr.mxu0 0.0
    %1031 = vmatpush1.msra.mxu0 0.0
    %1032 = vmatprep.subr.mxu0 0.0
    %1033 = vmatpush1.msra.mxu0 0.0
    %1034 = vmatprep.subr.mxu0 0.0
    %1035 = vmatpush1.msra.mxu0 0.0
    %1036 = vmatprep.subr.mxu0 0.0
    %1037 = vmatpush1.msra.mxu0 0.0
    %1038 = vmatprep.subr.mxu0 0.0
    %1039 = vmatpush1.msra.mxu0 0.0
    %1040 = vmatprep.subr.mxu0 0.0
    %1041 = vmatpush1.msra.mxu0 0.0
    %1042 = vmatprep.subr.mxu0 0.0
    %1043 = vmatpush1.msra.mxu0 0.0
    %1044 = vmatprep.subr.mxu0 0.0
    %1045 = vmatpush1.msra.mxu0 0.0
    %1046 = vmatprep.subr.mxu0 0.0
    %1047 = vmatpush1.msra.mxu0 0.0
    %1048 = vmatprep.subr.mxu0 0.0
    %1049 = vmatpush1.msra.mxu0 0.0
    %1050 = vmatprep.subr.mxu0 0.0
    %1051 = vmatpush1.msra.mxu0 0.0
    %1052 = vmatprep.subr.mxu0 0.0
    %1053 = vmatpush1.msra.mxu0 0.0
    %1054 = vmatprep.subr.mxu0 0.0
    %1055 = vmatpush1.msra.mxu0 0.0
    %1056 = vmatprep.subr.mxu0 0.0
    %1057 = vmatpush1.msra.mxu0 0.0
    %1058 = vmatprep.subr.mxu0 0.0
    %1059 = vmatpush1.msra.mxu0 0.0
    %1060 = vmatprep.mubr.f32.mxu0 0.0
    %v1061 = vand.u32 %v651, 4294901760
    %1062 = vmatmul.mubr.f32.gmra.mrb[0].mxu0 %v1061
    %v1063 = vpop.f32.mrb[0].mxu0
    %v1064 = vadd.f32 %v980, %v1063
    %v1065 = vpop.f32.mrb[0].mxu0
    %v1066 = vadd.f32 %v982, %v1065
    %1067 = vdwg.mxu0
    %v1068 = vand.u32 %v646, 4294901760
    %1069 = vmatprep.subr.mxu0 %v1068
    %v1070 = vand.u32 %v645, 4294901760
    %1071 = vmatpush1.msra.mxu0 %v1070
    %v1072 = vand.u32 %v648, 4294901760
    %1073 = vmatprep.subr.mxu0 %v1072
    %v1074 = vand.u32 %v647, 4294901760
    %1075 = vmatpush1.msra.mxu0 %v1074
    %1076 = vmatprep.subr.mxu0 0.0
    %1077 = vmatpush1.msra.mxu0 0.0
    %1078 = vmatprep.subr.mxu0 0.0
    %1079 = vmatpush1.msra.mxu0 0.0
    %1080 = vmatprep.subr.mxu0 0.0
    %1081 = vmatpush1.msra.mxu0 0.0
    %1082 = vmatprep.subr.mxu0 0.0
    %1083 = vmatpush1.msra.mxu0 0.0
    %1084 = vmatprep.subr.mxu0 0.0
    %1085 = vmatpush1.msra.mxu0 0.0
    %1086 = vmatprep.subr.mxu0 0.0
    %1087 = vmatpush1.msra.mxu0 0.0
    %1088 = vmatprep.subr.mxu0 0.0
    %1089 = vmatpush1.msra.mxu0 0.0
    %1090 = vmatprep.subr.mxu0 0.0
    %1091 = vmatpush1.msra.mxu0 0.0
    %1092 = vmatprep.subr.mxu0 0.0
    %1093 = vmatpush1.msra.mxu0 0.0
    %1094 = vmatprep.subr.mxu0 0.0
    %1095 = vmatpush1.msra.mxu0 0.0
    %1096 = vmatprep.subr.mxu0 0.0
    %1097 = vmatpush1.msra.mxu0 0.0
    %1098 = vmatprep.subr.mxu0 0.0
    %1099 = vmatpush1.msra.mxu0 0.0
    %1100 = vmatprep.subr.mxu0 0.0
    %1101 = vmatpush1.msra.mxu0 0.0
    %1102 = vmatprep.subr.mxu0 0.0
    %1103 = vmatpush1.msra.mxu0 0.0
    %1104 = vmatprep.subr.mxu0 0.0
    %1105 = vmatpush1.msra.mxu0 0.0
    %1106 = vmatprep.subr.mxu0 0.0
    %1107 = vmatpush1.msra.mxu0 0.0
    %1108 = vmatprep.subr.mxu0 0.0
    %1109 = vmatpush1.msra.mxu0 0.0
    %1110 = vmatprep.subr.mxu0 0.0
    %1111 = vmatpush1.msra.mxu0 0.0
    %1112 = vmatprep.subr.mxu0 0.0
    %1113 = vmatpush1.msra.mxu0 0.0
    %1114 = vmatprep.subr.mxu0 0.0
    %1115 = vmatpush1.msra.mxu0 0.0
    %1116 = vmatprep.subr.mxu0 0.0
    %1117 = vmatpush1.msra.mxu0 0.0
    %1118 = vmatprep.subr.mxu0 0.0
    %1119 = vmatpush1.msra.mxu0 0.0
    %1120 = vmatprep.subr.mxu0 0.0
    %1121 = vmatpush1.msra.mxu0 0.0
    %1122 = vmatprep.subr.mxu0 0.0
    %1123 = vmatpush1.msra.mxu0 0.0
    %1124 = vmatprep.subr.mxu0 0.0
    %1125 = vmatpush1.msra.mxu0 0.0
    %1126 = vmatprep.subr.mxu0 0.0
    %1127 = vmatpush1.msra.mxu0 0.0
    %1128 = vmatprep.subr.mxu0 0.0
    %1129 = vmatpush1.msra.mxu0 0.0
    %1130 = vmatprep.subr.mxu0 0.0
    %1131 = vmatpush1.msra.mxu0 0.0
    %1132 = vmatprep.subr.mxu0 0.0
    %1133 = vmatpush1.msra.mxu0 0.0
    %1134 = vmatprep.subr.mxu0 0.0
    %1135 = vmatpush1.msra.mxu0 0.0
    %1136 = vmatprep.mubr.f32.mxu0 0.0
    %v1137 = vand.u32 %v651, 4294901760
    %1138 = vmatmul.mubr.f32.gmra.mrb[0].mxu0 %v1137
    %v1139 = vpop.f32.mrb[0].mxu0
    %v1140 = vadd.f32 %v1064, %v1139
    %v1141 = vpop.f32.mrb[0].mxu0
    %v1142 = vadd.f32 %v1066, %v1141
    %1143 = vdwg.mxu0
    %v1144 = vld [vmem:[%s5] sm:$0x1]
    %v1145 = vlaneseq
    %v1146 = vshrl.u32 %v1145, 7
    %v1147 = vsub.s32 0, %v1146
    %v1148 = vrot.slane %v1144, %v1147
    %v1149 = vadd.f32 %v641, %v1148
    %v1150 = vld [vmem:[%s5 + $0x1] sm:$0x1]
    %v1151 = vlaneseq
    %v1152 = vshrl.u32 %v1151, 7
    %v1153 = vsub.s32 0, %v1152
    %v1154 = vrot.slane %v1150, %v1153
    %v1155 = vadd.f32 %v1140, %v1154
    %v1156 = vmul.f32 %v1149, %v1155
    %v1157 = vld [vmem:[#allocation10] sm:$0xff]
    %v1158 = vld [vmem:[#allocation10 + $0x8] sm:$0xff]
    %v1159 = vld [vmem:[#allocation10 + $0x10] sm:$0xff]
    %v1160 = vld [vmem:[#allocation10 + $0x18] sm:$0xff]
    %v1161 = vld [vmem:[#allocation10 + $0x20] sm:$0xff]
    %v1162 = vld [vmem:[#allocation10 + $0x28] sm:$0xff]
    %v1163 = vld [vmem:[#allocation10 + $0x30] sm:$0xff]
    %v1164 = vld [vmem:[#allocation10 + $0x38] sm:$0xff]
    %v1165 = vld [vmem:[#allocation10 + $0x40] sm:$0xff]
    %v1166 = vld [vmem:[#allocation10 + $0x48] sm:$0xff]
    %v1167 = vld [vmem:[#allocation10 + $0x50] sm:$0xff]
    %v1168 = vld [vmem:[#allocation10 + $0x58] sm:$0xff]
    %v1169 = vld [vmem:[#allocation10 + $0x60] sm:$0xff]
    %v1170 = vld [vmem:[#allocation10 + $0x68] sm:$0xff]
    %v1171 = vld [vmem:[#allocation10 + $0x70] sm:$0xff]
    %v1172 = vld [vmem:[#allocation10 + $0x78] sm:$0xff]
    %1173 = vmatprep.subr.mxu0 0.0
    %v1174 = vand.u32 %v1157, 4294901760
    %1175 = vmatpush1.msra.mxu0 %v1174
    %1176 = vmatprep.subr.mxu0 0.0
    %v1177 = vand.u32 %v1158, 4294901760
    %1178 = vmatpush1.msra.mxu0 %v1177
    %1179 = vmatprep.subr.mxu0 0.0
    %v1180 = vand.u32 %v1159, 4294901760
    %1181 = vmatpush1.msra.mxu0 %v1180
    %1182 = vmatprep.subr.mxu0 0.0
    %v1183 = vand.u32 %v1160, 4294901760
    %1184 = vmatpush1.msra.mxu0 %v1183
    %1185 = vmatprep.subr.mxu0 0.0
    %v1186 = vand.u32 %v1161, 4294901760
    %1187 = vmatpush1.msra.mxu0 %v1186
    %1188 = vmatprep.subr.mxu0 0.0
    %v1189 = vand.u32 %v1162, 4294901760
    %1190 = vmatpush1.msra.mxu0 %v1189
    %1191 = vmatprep.subr.mxu0 0.0
    %v1192 = vand.u32 %v1163, 4294901760
    %1193 = vmatpush1.msra.mxu0 %v1192
    %1194 = vmatprep.subr.mxu0 0.0
    %v1195 = vand.u32 %v1164, 4294901760
    %1196 = vmatpush1.msra.mxu0 %v1195
    %1197 = vmatprep.subr.mxu0 0.0
    %v1198 = vand.u32 %v1165, 4294901760
    %1199 = vmatpush1.msra.mxu0 %v1198
    %1200 = vmatprep.subr.mxu0 0.0
    %v1201 = vand.u32 %v1166, 4294901760
    %1202 = vmatpush1.msra.mxu0 %v1201
    %1203 = vmatprep.subr.mxu0 0.0
    %v1204 = vand.u32 %v1167, 4294901760
    %1205 = vmatpush1.msra.mxu0 %v1204
    %1206 = vmatprep.subr.mxu0 0.0
    %v1207 = vand.u32 %v1168, 4294901760
    %1208 = vmatpush1.msra.mxu0 %v1207
    %1209 = vmatprep.subr.mxu0 0.0
    %v1210 = vand.u32 %v1169, 4294901760
    %1211 = vmatpush1.msra.mxu0 %v1210
    %1212 = vmatprep.subr.mxu0 0.0
    %v1213 = vand.u32 %v1170, 4294901760
    %1214 = vmatpush1.msra.mxu0 %v1213
    %1215 = vmatprep.subr.mxu0 0.0
    %v1216 = vand.u32 %v1171, 4294901760
    %1217 = vmatpush1.msra.mxu0 %v1216
    %1218 = vmatprep.subr.mxu0 0.0
    %v1219 = vand.u32 %v1172, 4294901760
    %1220 = vmatpush1.msra.mxu0 %v1219
    %1221 = vmatprep.subr.mxu0 0.0
    %1222 = vmatpush1.msra.mxu0 0.0
    %1223 = vmatprep.subr.mxu0 0.0
    %1224 = vmatpush1.msra.mxu0 0.0
    %1225 = vmatprep.subr.mxu0 0.0
    %1226 = vmatpush1.msra.mxu0 0.0
    %1227 = vmatprep.subr.mxu0 0.0
    %1228 = vmatpush1.msra.mxu0 0.0
    %1229 = vmatprep.subr.mxu0 0.0
    %1230 = vmatpush1.msra.mxu0 0.0
    %1231 = vmatprep.subr.mxu0 0.0
    %1232 = vmatpush1.msra.mxu0 0.0
    %1233 = vmatprep.subr.mxu0 0.0
    %1234 = vmatpush1.msra.mxu0 0.0
    %1235 = vmatprep.subr.mxu0 0.0
    %1236 = vmatpush1.msra.mxu0 0.0
    %1237 = vmatprep.subr.mxu0 0.0
    %1238 = vmatpush1.msra.mxu0 0.0
    %1239 = vmatprep.subr.mxu0 0.0
    %1240 = vmatpush1.msra.mxu0 0.0
    %1241 = vmatprep.subr.mxu0 0.0
    %1242 = vmatpush1.msra.mxu0 0.0
    %1243 = vmatprep.subr.mxu0 0.0
    %1244 = vmatpush1.msra.mxu0 0.0
    %1245 = vmatprep.subr.mxu0 0.0
    %1246 = vmatpush1.msra.mxu0 0.0
    %1247 = vmatprep.subr.mxu0 0.0
    %1248 = vmatpush1.msra.mxu0 0.0
    %1249 = vmatprep.subr.mxu0 0.0
    %1250 = vmatpush1.msra.mxu0 0.0
    %1251 = vmatprep.subr.mxu0 0.0
    %1252 = vmatpush1.msra.mxu0 0.0
    %1253 = vmatprep.mubr.f32.mxu0 0.0
    %v1254 = vand.u32 %v1156, 4294901760
    %v1255 = vsub.f32 %v1156, %v1254
    %v1256 = vand.u32 %v1255, 4294901760
    %v1257 = vsub.f32 %v1255, %v1256
    %v1258 = vand.u32 %v1257, 4294901760
    %1259 = vmatmul.mubr.f32.gmra.mrb[0].mxu0 %v1258
    %v1260 = vpop.f32.mrb[0].mxu0
    %v1261 = vadd.f32 %v643, %v1260
    %v1262 = vpop.f32.mrb[0].mxu0
    %1263 = vdwg.mxu0
    %1264 = vmatprep.subr.mxu0 0.0
    %v1265 = vand.u32 %v1157, 4294901760
    %v1266 = vsub.f32 %v1157, %v1265
    %v1267 = vand.u32 %v1266, 4294901760
    %v1268 = vsub.f32 %v1266, %v1267
    %v1269 = vand.u32 %v1268, 4294901760
    %1270 = vmatpush1.msra.mxu0 %v1269
    %1271 = vmatprep.subr.mxu0 0.0
    %v1272 = vand.u32 %v1158, 4294901760
    %v1273 = vsub.f32 %v1158, %v1272
    %v1274 = vand.u32 %v1273, 4294901760
    %v1275 = vsub.f32 %v1273, %v1274
    %v1276 = vand.u32 %v1275, 4294901760
    %1277 = vmatpush1.msra.mxu0 %v1276
    %1278 = vmatprep.subr.mxu0 0.0
    %v1279 = vand.u32 %v1159, 4294901760
    %v1280 = vsub.f32 %v1159, %v1279
    %v1281 = vand.u32 %v1280, 4294901760
    %v1282 = vsub.f32 %v1280, %v1281
    %v1283 = vand.u32 %v1282, 4294901760
    %1284 = vmatpush1.msra.mxu0 %v1283
    %1285 = vmatprep.subr.mxu0 0.0
    %v1286 = vand.u32 %v1160, 4294901760
    %v1287 = vsub.f32 %v1160, %v1286
    %v1288 = vand.u32 %v1287, 4294901760
    %v1289 = vsub.f32 %v1287, %v1288
    %v1290 = vand.u32 %v1289, 4294901760
    %1291 = vmatpush1.msra.mxu0 %v1290
    %1292 = vmatprep.subr.mxu0 0.0
    %v1293 = vand.u32 %v1161, 4294901760
    %v1294 = vsub.f32 %v1161, %v1293
    %v1295 = vand.u32 %v1294, 4294901760
    %v1296 = vsub.f32 %v1294, %v1295
    %v1297 = vand.u32 %v1296, 4294901760
    %1298 = vmatpush1.msra.mxu0 %v1297
    %1299 = vmatprep.subr.mxu0 0.0
    %v1300 = vand.u32 %v1162, 4294901760
    %v1301 = vsub.f32 %v1162, %v1300
    %v1302 = vand.u32 %v1301, 4294901760
    %v1303 = vsub.f32 %v1301, %v1302
    %v1304 = vand.u32 %v1303, 4294901760
    %1305 = vmatpush1.msra.mxu0 %v1304
    %1306 = vmatprep.subr.mxu0 0.0
    %v1307 = vand.u32 %v1163, 4294901760
    %v1308 = vsub.f32 %v1163, %v1307
    %v1309 = vand.u32 %v1308, 4294901760
    %v1310 = vsub.f32 %v1308, %v1309
    %v1311 = vand.u32 %v1310, 4294901760
    %1312 = vmatpush1.msra.mxu0 %v1311
    %1313 = vmatprep.subr.mxu0 0.0
    %v1314 = vand.u32 %v1164, 4294901760
    %v1315 = vsub.f32 %v1164, %v1314
    %v1316 = vand.u32 %v1315, 4294901760
    %v1317 = vsub.f32 %v1315, %v1316
    %v1318 = vand.u32 %v1317, 4294901760
    %1319 = vmatpush1.msra.mxu0 %v1318
    %1320 = vmatprep.subr.mxu0 0.0
    %v1321 = vand.u32 %v1165, 4294901760
    %v1322 = vsub.f32 %v1165, %v1321
    %v1323 = vand.u32 %v1322, 4294901760
    %v1324 = vsub.f32 %v1322, %v1323
    %v1325 = vand.u32 %v1324, 4294901760
    %1326 = vmatpush1.msra.mxu0 %v1325
    %1327 = vmatprep.subr.mxu0 0.0
    %v1328 = vand.u32 %v1166, 4294901760
    %v1329 = vsub.f32 %v1166, %v1328
    %v1330 = vand.u32 %v1329, 4294901760
    %v1331 = vsub.f32 %v1329, %v1330
    %v1332 = vand.u32 %v1331, 4294901760
    %1333 = vmatpush1.msra.mxu0 %v1332
    %1334 = vmatprep.subr.mxu0 0.0
    %v1335 = vand.u32 %v1167, 4294901760
    %v1336 = vsub.f32 %v1167, %v1335
    %v1337 = vand.u32 %v1336, 4294901760
    %v1338 = vsub.f32 %v1336, %v1337
    %v1339 = vand.u32 %v1338, 4294901760
    %1340 = vmatpush1.msra.mxu0 %v1339
    %1341 = vmatprep.subr.mxu0 0.0
    %v1342 = vand.u32 %v1168, 4294901760
    %v1343 = vsub.f32 %v1168, %v1342
    %v1344 = vand.u32 %v1343, 4294901760
    %v1345 = vsub.f32 %v1343, %v1344
    %v1346 = vand.u32 %v1345, 4294901760
    %1347 = vmatpush1.msra.mxu0 %v1346
    %1348 = vmatprep.subr.mxu0 0.0
    %v1349 = vand.u32 %v1169, 4294901760
    %v1350 = vsub.f32 %v1169, %v1349
    %v1351 = vand.u32 %v1350, 4294901760
    %v1352 = vsub.f32 %v1350, %v1351
    %v1353 = vand.u32 %v1352, 4294901760
    %1354 = vmatpush1.msra.mxu0 %v1353
    %1355 = vmatprep.subr.mxu0 0.0
    %v1356 = vand.u32 %v1170, 4294901760
    %v1357 = vsub.f32 %v1170, %v1356
    %v1358 = vand.u32 %v1357, 4294901760
    %v1359 = vsub.f32 %v1357, %v1358
    %v1360 = vand.u32 %v1359, 4294901760
    %1361 = vmatpush1.msra.mxu0 %v1360
    %1362 = vmatprep.subr.mxu0 0.0
    %v1363 = vand.u32 %v1171, 4294901760
    %v1364 = vsub.f32 %v1171, %v1363
    %v1365 = vand.u32 %v1364, 4294901760
    %v1366 = vsub.f32 %v1364, %v1365
    %v1367 = vand.u32 %v1366, 4294901760
    %1368 = vmatpush1.msra.mxu0 %v1367
    %1369 = vmatprep.subr.mxu0 0.0
    %v1370 = vand.u32 %v1172, 4294901760
    %v1371 = vsub.f32 %v1172, %v1370
    %v1372 = vand.u32 %v1371, 4294901760
    %v1373 = vsub.f32 %v1371, %v1372
    %v1374 = vand.u32 %v1373, 4294901760
    %1375 = vmatpush1.msra.mxu0 %v1374
    %1376 = vmatprep.subr.mxu0 0.0
    %1377 = vmatpush1.msra.mxu0 0.0
    %1378 = vmatprep.subr.mxu0 0.0
    %1379 = vmatpush1.msra.mxu0 0.0
    %1380 = vmatprep.subr.mxu0 0.0
    %1381 = vmatpush1.msra.mxu0 0.0
    %1382 = vmatprep.subr.mxu0 0.0
    %1383 = vmatpush1.msra.mxu0 0.0
    %1384 = vmatprep.subr.mxu0 0.0
    %1385 = vmatpush1.msra.mxu0 0.0
    %1386 = vmatprep.subr.mxu0 0.0
    %1387 = vmatpush1.msra.mxu0 0.0
    %1388 = vmatprep.subr.mxu0 0.0
    %1389 = vmatpush1.msra.mxu0 0.0
    %1390 = vmatprep.subr.mxu0 0.0
    %1391 = vmatpush1.msra.mxu0 0.0
    %1392 = vmatprep.subr.mxu0 0.0
    %1393 = vmatpush1.msra.mxu0 0.0
    %1394 = vmatprep.subr.mxu0 0.0
    %1395 = vmatpush1.msra.mxu0 0.0
    %1396 = vmatprep.subr.mxu0 0.0
    %1397 = vmatpush1.msra.mxu0 0.0
    %1398 = vmatprep.subr.mxu0 0.0
    %1399 = vmatpush1.msra.mxu0 0.0
    %1400 = vmatprep.subr.mxu0 0.0
    %1401 = vmatpush1.msra.mxu0 0.0
    %1402 = vmatprep.subr.mxu0 0.0
    %1403 = vmatpush1.msra.mxu0 0.0
    %1404 = vmatprep.subr.mxu0 0.0
    %1405 = vmatpush1.msra.mxu0 0.0
    %1406 = vmatprep.subr.mxu0 0.0
    %1407 = vmatpush1.msra.mxu0 0.0
    %1408 = vmatprep.mubr.f32.mxu0 0.0
    %v1409 = vand.u32 %v1156, 4294901760
    %1410 = vmatmul.mubr.f32.gmra.mrb[0].mxu0 %v1409
    %v1411 = vpop.f32.mrb[0].mxu0
    %v1412 = vadd.f32 %v1261, %v1411
    %v1413 = vpop.f32.mrb[0].mxu0
    %1414 = vdwg.mxu0
    %1415 = vmatprep.subr.mxu0 0.0
    %v1416 = vand.u32 %v1157, 4294901760
    %v1417 = vsub.f32 %v1157, %v1416
    %1418 = vmatpush1.msra.mxu0 %v1417
    %1419 = vmatprep.subr.mxu0 0.0
    %v1420 = vand.u32 %v1158, 4294901760
    %v1421 = vsub.f32 %v1158, %v1420
    %1422 = vmatpush1.msra.mxu0 %v1421
    %1423 = vmatprep.subr.mxu0 0.0
    %v1424 = vand.u32 %v1159, 4294901760
    %v1425 = vsub.f32 %v1159, %v1424
    %1426 = vmatpush1.msra.mxu0 %v1425
    %1427 = vmatprep.subr.mxu0 0.0
    %v1428 = vand.u32 %v1160, 4294901760
    %v1429 = vsub.f32 %v1160, %v1428
    %1430 = vmatpush1.msra.mxu0 %v1429
    %1431 = vmatprep.subr.mxu0 0.0
    %v1432 = vand.u32 %v1161, 4294901760
    %v1433 = vsub.f32 %v1161, %v1432
    %1434 = vmatpush1.msra.mxu0 %v1433
    %1435 = vmatprep.subr.mxu0 0.0
    %v1436 = vand.u32 %v1162, 4294901760
    %v1437 = vsub.f32 %v1162, %v1436
    %1438 = vmatpush1.msra.mxu0 %v1437
    %1439 = vmatprep.subr.mxu0 0.0
    %v1440 = vand.u32 %v1163, 4294901760
    %v1441 = vsub.f32 %v1163, %v1440
    %1442 = vmatpush1.msra.mxu0 %v1441
    %1443 = vmatprep.subr.mxu0 0.0
    %v1444 = vand.u32 %v1164, 4294901760
    %v1445 = vsub.f32 %v1164, %v1444
    %1446 = vmatpush1.msra.mxu0 %v1445
    %1447 = vmatprep.subr.mxu0 0.0
    %v1448 = vand.u32 %v1165, 4294901760
    %v1449 = vsub.f32 %v1165, %v1448
    %1450 = vmatpush1.msra.mxu0 %v1449
    %1451 = vmatprep.subr.mxu0 0.0
    %v1452 = vand.u32 %v1166, 4294901760
    %v1453 = vsub.f32 %v1166, %v1452
    %1454 = vmatpush1.msra.mxu0 %v1453
    %1455 = vmatprep.subr.mxu0 0.0
    %v1456 = vand.u32 %v1167, 4294901760
    %v1457 = vsub.f32 %v1167, %v1456
    %1458 = vmatpush1.msra.mxu0 %v1457
    %1459 = vmatprep.subr.mxu0 0.0
    %v1460 = vand.u32 %v1168, 4294901760
    %v1461 = vsub.f32 %v1168, %v1460
    %1462 = vmatpush1.msra.mxu0 %v1461
    %1463 = vmatprep.subr.mxu0 0.0
    %v1464 = vand.u32 %v1169, 4294901760
    %v1465 = vsub.f32 %v1169, %v1464
    %1466 = vmatpush1.msra.mxu0 %v1465
    %1467 = vmatprep.subr.mxu0 0.0
    %v1468 = vand.u32 %v1170, 4294901760
    %v1469 = vsub.f32 %v1170, %v1468
    %1470 = vmatpush1.msra.mxu0 %v1469
    %1471 = vmatprep.subr.mxu0 0.0
    %v1472 = vand.u32 %v1171, 4294901760
    %v1473 = vsub.f32 %v1171, %v1472
    %1474 = vmatpush1.msra.mxu0 %v1473
    %1475 = vmatprep.subr.mxu0 0.0
    %v1476 = vand.u32 %v1172, 4294901760
    %v1477 = vsub.f32 %v1172, %v1476
    %1478 = vmatpush1.msra.mxu0 %v1477
    %1479 = vmatprep.subr.mxu0 0.0
    %1480 = vmatpush1.msra.mxu0 0.0
    %1481 = vmatprep.subr.mxu0 0.0
    %1482 = vmatpush1.msra.mxu0 0.0
    %1483 = vmatprep.subr.mxu0 0.0
    %1484 = vmatpush1.msra.mxu0 0.0
    %1485 = vmatprep.subr.mxu0 0.0
    %1486 = vmatpush1.msra.mxu0 0.0
    %1487 = vmatprep.subr.mxu0 0.0
    %1488 = vmatpush1.msra.mxu0 0.0
    %1489 = vmatprep.subr.mxu0 0.0
    %1490 = vmatpush1.msra.mxu0 0.0
    %1491 = vmatprep.subr.mxu0 0.0
    %1492 = vmatpush1.msra.mxu0 0.0
    %1493 = vmatprep.subr.mxu0 0.0
    %1494 = vmatpush1.msra.mxu0 0.0
    %1495 = vmatprep.subr.mxu0 0.0
    %1496 = vmatpush1.msra.mxu0 0.0
    %1497 = vmatprep.subr.mxu0 0.0
    %1498 = vmatpush1.msra.mxu0 0.0
    %1499 = vmatprep.subr.mxu0 0.0
    %1500 = vmatpush1.msra.mxu0 0.0
    %1501 = vmatprep.subr.mxu0 0.0
    %1502 = vmatpush1.msra.mxu0 0.0
    %1503 = vmatprep.subr.mxu0 0.0
    %1504 = vmatpush1.msra.mxu0 0.0
    %1505 = vmatprep.subr.mxu0 0.0
    %1506 = vmatpush1.msra.mxu0 0.0
    %1507 = vmatprep.subr.mxu0 0.0
    %1508 = vmatpush1.msra.mxu0 0.0
    %1509 = vmatprep.subr.mxu0 0.0
    %1510 = vmatpush1.msra.mxu0 0.0
    %1511 = vmatprep.mubr.f32.mxu0 0.0
    %v1512 = vand.u32 %v1156, 4294901760
    %v1513 = vsub.f32 %v1156, %v1512
    %1514 = vmatmul.mubr.f32.gmra.mrb[0].mxu0 %v1513
    %v1515 = vpop.f32.mrb[0].mxu0
    %v1516 = vadd.f32 %v1412, %v1515
    %v1517 = vpop.f32.mrb[0].mxu0
    %1518 = vdwg.mxu0
    %1519 = vmatprep.subr.mxu0 0.0
    %v1520 = vand.u32 %v1157, 4294901760
    %1521 = vmatpush1.msra.mxu0 %v1520
    %1522 = vmatprep.subr.mxu0 0.0
    %v1523 = vand.u32 %v1158, 4294901760
    %1524 = vmatpush1.msra.mxu0 %v1523
    %1525 = vmatprep.subr.mxu0 0.0
    %v1526 = vand.u32 %v1159, 4294901760
    %1527 = vmatpush1.msra.mxu0 %v1526
    %1528 = vmatprep.subr.mxu0 0.0
    %v1529 = vand.u32 %v1160, 4294901760
    %1530 = vmatpush1.msra.mxu0 %v1529
    %1531 = vmatprep.subr.mxu0 0.0
    %v1532 = vand.u32 %v1161, 4294901760
    %1533 = vmatpush1.msra.mxu0 %v1532
    %1534 = vmatprep.subr.mxu0 0.0
    %v1535 = vand.u32 %v1162, 4294901760
    %1536 = vmatpush1.msra.mxu0 %v1535
    %1537 = vmatprep.subr.mxu0 0.0
    %v1538 = vand.u32 %v1163, 4294901760
    %1539 = vmatpush1.msra.mxu0 %v1538
    %1540 = vmatprep.subr.mxu0 0.0
    %v1541 = vand.u32 %v1164, 4294901760
    %1542 = vmatpush1.msra.mxu0 %v1541
    %1543 = vmatprep.subr.mxu0 0.0
    %v1544 = vand.u32 %v1165, 4294901760
    %1545 = vmatpush1.msra.mxu0 %v1544
    %1546 = vmatprep.subr.mxu0 0.0
    %v1547 = vand.u32 %v1166, 4294901760
    %1548 = vmatpush1.msra.mxu0 %v1547
    %1549 = vmatprep.subr.mxu0 0.0
    %v1550 = vand.u32 %v1167, 4294901760
    %1551 = vmatpush1.msra.mxu0 %v1550
    %1552 = vmatprep.subr.mxu0 0.0
    %v1553 = vand.u32 %v1168, 4294901760
    %1554 = vmatpush1.msra.mxu0 %v1553
    %1555 = vmatprep.subr.mxu0 0.0
    %v1556 = vand.u32 %v1169, 4294901760
    %1557 = vmatpush1.msra.mxu0 %v1556
    %1558 = vmatprep.subr.mxu0 0.0
    %v1559 = vand.u32 %v1170, 4294901760
    %1560 = vmatpush1.msra.mxu0 %v1559
    %1561 = vmatprep.subr.mxu0 0.0
    %v1562 = vand.u32 %v1171, 4294901760
    %1563 = vmatpush1.msra.mxu0 %v1562
    %1564 = vmatprep.subr.mxu0 0.0
    %v1565 = vand.u32 %v1172, 4294901760
    %1566 = vmatpush1.msra.mxu0 %v1565
    %1567 = vmatprep.subr.mxu0 0.0
    %1568 = vmatpush1.msra.mxu0 0.0
    %1569 = vmatprep.subr.mxu0 0.0
    %1570 = vmatpush1.msra.mxu0 0.0
    %1571 = vmatprep.subr.mxu0 0.0
    %1572 = vmatpush1.msra.mxu0 0.0
    %1573 = vmatprep.subr.mxu0 0.0
    %1574 = vmatpush1.msra.mxu0 0.0
    %1575 = vmatprep.subr.mxu0 0.0
    %1576 = vmatpush1.msra.mxu0 0.0
    %1577 = vmatprep.subr.mxu0 0.0
    %1578 = vmatpush1.msra.mxu0 0.0
    %1579 = vmatprep.subr.mxu0 0.0
    %1580 = vmatpush1.msra.mxu0 0.0
    %1581 = vmatprep.subr.mxu0 0.0
    %1582 = vmatpush1.msra.mxu0 0.0
    %1583 = vmatprep.subr.mxu0 0.0
    %1584 = vmatpush1.msra.mxu0 0.0
    %1585 = vmatprep.subr.mxu0 0.0
    %1586 = vmatpush1.msra.mxu0 0.0
    %1587 = vmatprep.subr.mxu0 0.0
    %1588 = vmatpush1.msra.mxu0 0.0
    %1589 = vmatprep.subr.mxu0 0.0
    %1590 = vmatpush1.msra.mxu0 0.0
    %1591 = vmatprep.subr.mxu0 0.0
    %1592 = vmatpush1.msra.mxu0 0.0
    %1593 = vmatprep.subr.mxu0 0.0
    %1594 = vmatpush1.msra.mxu0 0.0
    %1595 = vmatprep.subr.mxu0 0.0
    %1596 = vmatpush1.msra.mxu0 0.0
    %1597 = vmatprep.subr.mxu0 0.0
    %1598 = vmatpush1.msra.mxu0 0.0
    %1599 = vmatprep.mubr.f32.mxu0 0.0
    %v1600 = vand.u32 %v1156, 4294901760
    %v1601 = vsub.f32 %v1156, %v1600
    %v1602 = vand.u32 %v1601, 4294901760
    %1603 = vmatmul.mubr.f32.gmra.mrb[0].mxu0 %v1602
    %v1604 = vpop.f32.mrb[0].mxu0
    %v1605 = vadd.f32 %v1516, %v1604
    %v1606 = vpop.f32.mrb[0].mxu0
    %1607 = vdwg.mxu0
    %1608 = vmatprep.subr.mxu0 0.0
    %v1609 = vand.u32 %v1157, 4294901760
    %v1610 = vsub.f32 %v1157, %v1609
    %v1611 = vand.u32 %v1610, 4294901760
    %1612 = vmatpush1.msra.mxu0 %v1611
    %1613 = vmatprep.subr.mxu0 0.0
    %v1614 = vand.u32 %v1158, 4294901760
    %v1615 = vsub.f32 %v1158, %v1614
    %v1616 = vand.u32 %v1615, 4294901760
    %1617 = vmatpush1.msra.mxu0 %v1616
    %1618 = vmatprep.subr.mxu0 0.0
    %v1619 = vand.u32 %v1159, 4294901760
    %v1620 = vsub.f32 %v1159, %v1619
    %v1621 = vand.u32 %v1620, 4294901760
    %1622 = vmatpush1.msra.mxu0 %v1621
    %1623 = vmatprep.subr.mxu0 0.0
    %v1624 = vand.u32 %v1160, 4294901760
    %v1625 = vsub.f32 %v1160, %v1624
    %v1626 = vand.u32 %v1625, 4294901760
    %1627 = vmatpush1.msra.mxu0 %v1626
    %1628 = vmatprep.subr.mxu0 0.0
    %v1629 = vand.u32 %v1161, 4294901760
    %v1630 = vsub.f32 %v1161, %v1629
    %v1631 = vand.u32 %v1630, 4294901760
    %1632 = vmatpush1.msra.mxu0 %v1631
    %1633 = vmatprep.subr.mxu0 0.0
    %v1634 = vand.u32 %v1162, 4294901760
    %v1635 = vsub.f32 %v1162, %v1634
    %v1636 = vand.u32 %v1635, 4294901760
    %1637 = vmatpush1.msra.mxu0 %v1636
    %1638 = vmatprep.subr.mxu0 0.0
    %v1639 = vand.u32 %v1163, 4294901760
    %v1640 = vsub.f32 %v1163, %v1639
    %v1641 = vand.u32 %v1640, 4294901760
    %1642 = vmatpush1.msra.mxu0 %v1641
    %1643 = vmatprep.subr.mxu0 0.0
    %v1644 = vand.u32 %v1164, 4294901760
    %v1645 = vsub.f32 %v1164, %v1644
    %v1646 = vand.u32 %v1645, 4294901760
    %1647 = vmatpush1.msra.mxu0 %v1646
    %1648 = vmatprep.subr.mxu0 0.0
    %v1649 = vand.u32 %v1165, 4294901760
    %v1650 = vsub.f32 %v1165, %v1649
    %v1651 = vand.u32 %v1650, 4294901760
    %1652 = vmatpush1.msra.mxu0 %v1651
    %1653 = vmatprep.subr.mxu0 0.0
    %v1654 = vand.u32 %v1166, 4294901760
    %v1655 = vsub.f32 %v1166, %v1654
    %v1656 = vand.u32 %v1655, 4294901760
    %1657 = vmatpush1.msra.mxu0 %v1656
    %1658 = vmatprep.subr.mxu0 0.0
    %v1659 = vand.u32 %v1167, 4294901760
    %v1660 = vsub.f32 %v1167, %v1659
    %v1661 = vand.u32 %v1660, 4294901760
    %1662 = vmatpush1.msra.mxu0 %v1661
    %1663 = vmatprep.subr.mxu0 0.0
    %v1664 = vand.u32 %v1168, 4294901760
    %v1665 = vsub.f32 %v1168, %v1664
    %v1666 = vand.u32 %v1665, 4294901760
    %1667 = vmatpush1.msra.mxu0 %v1666
    %1668 = vmatprep.subr.mxu0 0.0
    %v1669 = vand.u32 %v1169, 4294901760
    %v1670 = vsub.f32 %v1169, %v1669
    %v1671 = vand.u32 %v1670, 4294901760
    %1672 = vmatpush1.msra.mxu0 %v1671
    %1673 = vmatprep.subr.mxu0 0.0
    %v1674 = vand.u32 %v1170, 4294901760
    %v1675 = vsub.f32 %v1170, %v1674
    %v1676 = vand.u32 %v1675, 4294901760
    %1677 = vmatpush1.msra.mxu0 %v1676
    %1678 = vmatprep.subr.mxu0 0.0
    %v1679 = vand.u32 %v1171, 4294901760
    %v1680 = vsub.f32 %v1171, %v1679
    %v1681 = vand.u32 %v1680, 4294901760
    %1682 = vmatpush1.msra.mxu0 %v1681
    %1683 = vmatprep.subr.mxu0 0.0
    %v1684 = vand.u32 %v1172, 4294901760
    %v1685 = vsub.f32 %v1172, %v1684
    %v1686 = vand.u32 %v1685, 4294901760
    %1687 = vmatpush1.msra.mxu0 %v1686
    %1688 = vmatprep.subr.mxu0 0.0
    %1689 = vmatpush1.msra.mxu0 0.0
    %1690 = vmatprep.subr.mxu0 0.0
    %1691 = vmatpush1.msra.mxu0 0.0
    %1692 = vmatprep.subr.mxu0 0.0
    %1693 = vmatpush1.msra.mxu0 0.0
    %1694 = vmatprep.subr.mxu0 0.0
    %1695 = vmatpush1.msra.mxu0 0.0
    %1696 = vmatprep.subr.mxu0 0.0
    %1697 = vmatpush1.msra.mxu0 0.0
    %1698 = vmatprep.subr.mxu0 0.0
    %1699 = vmatpush1.msra.mxu0 0.0
    %1700 = vmatprep.subr.mxu0 0.0
    %1701 = vmatpush1.msra.mxu0 0.0
    %1702 = vmatprep.subr.mxu0 0.0
    %1703 = vmatpush1.msra.mxu0 0.0
    %1704 = vmatprep.subr.mxu0 0.0
    %1705 = vmatpush1.msra.mxu0 0.0
    %1706 = vmatprep.subr.mxu0 0.0
    %1707 = vmatpush1.msra.mxu0 0.0
    %1708 = vmatprep.subr.mxu0 0.0
    %1709 = vmatpush1.msra.mxu0 0.0
    %1710 = vmatprep.subr.mxu0 0.0
    %1711 = vmatpush1.msra.mxu0 0.0
    %1712 = vmatprep.subr.mxu0 0.0
    %1713 = vmatpush1.msra.mxu0 0.0
    %1714 = vmatprep.subr.mxu0 0.0
    %1715 = vmatpush1.msra.mxu0 0.0
    %1716 = vmatprep.subr.mxu0 0.0
    %1717 = vmatpush1.msra.mxu0 0.0
    %1718 = vmatprep.subr.mxu0 0.0
    %1719 = vmatpush1.msra.mxu0 0.0
    %1720 = vmatprep.mubr.f32.mxu0 0.0
    %v1721 = vand.u32 %v1156, 4294901760
    %1722 = vmatmul.mubr.f32.gmra.mrb[0].mxu0 %v1721
    %v1723 = vpop.f32.mrb[0].mxu0
    %v1724 = vadd.f32 %v1605, %v1723
    %v1725 = vpop.f32.mrb[0].mxu0
    %1726 = vdwg.mxu0
    %1727 = vmatprep.subr.mxu0 0.0
    %v1728 = vand.u32 %v1157, 4294901760
    %1729 = vmatpush1.msra.mxu0 %v1728
    %1730 = vmatprep.subr.mxu0 0.0
    %v1731 = vand.u32 %v1158, 4294901760
    %1732 = vmatpush1.msra.mxu0 %v1731
    %1733 = vmatprep.subr.mxu0 0.0
    %v1734 = vand.u32 %v1159, 4294901760
    %1735 = vmatpush1.msra.mxu0 %v1734
    %1736 = vmatprep.subr.mxu0 0.0
    %v1737 = vand.u32 %v1160, 4294901760
    %1738 = vmatpush1.msra.mxu0 %v1737
    %1739 = vmatprep.subr.mxu0 0.0
    %v1740 = vand.u32 %v1161, 4294901760
    %1741 = vmatpush1.msra.mxu0 %v1740
    %1742 = vmatprep.subr.mxu0 0.0
    %v1743 = vand.u32 %v1162, 4294901760
    %1744 = vmatpush1.msra.mxu0 %v1743
    %1745 = vmatprep.subr.mxu0 0.0
    %v1746 = vand.u32 %v1163, 4294901760
    %1747 = vmatpush1.msra.mxu0 %v1746
    %1748 = vmatprep.subr.mxu0 0.0
    %v1749 = vand.u32 %v1164, 4294901760
    %1750 = vmatpush1.msra.mxu0 %v1749
    %1751 = vmatprep.subr.mxu0 0.0
    %v1752 = vand.u32 %v1165, 4294901760
    %1753 = vmatpush1.msra.mxu0 %v1752
    %1754 = vmatprep.subr.mxu0 0.0
    %v1755 = vand.u32 %v1166, 4294901760
    %1756 = vmatpush1.msra.mxu0 %v1755
    %1757 = vmatprep.subr.mxu0 0.0
    %v1758 = vand.u32 %v1167, 4294901760
    %1759 = vmatpush1.msra.mxu0 %v1758
    %1760 = vmatprep.subr.mxu0 0.0
    %v1761 = vand.u32 %v1168, 4294901760
    %1762 = vmatpush1.msra.mxu0 %v1761
    %1763 = vmatprep.subr.mxu0 0.0
    %v1764 = vand.u32 %v1169, 4294901760
    %1765 = vmatpush1.msra.mxu0 %v1764
    %1766 = vmatprep.subr.mxu0 0.0
    %v1767 = vand.u32 %v1170, 4294901760
    %1768 = vmatpush1.msra.mxu0 %v1767
    %1769 = vmatprep.subr.mxu0 0.0
    %v1770 = vand.u32 %v1171, 4294901760
    %1771 = vmatpush1.msra.mxu0 %v1770
    %1772 = vmatprep.subr.mxu0 0.0
    %v1773 = vand.u32 %v1172, 4294901760
    %1774 = vmatpush1.msra.mxu0 %v1773
    %1775 = vmatprep.subr.mxu0 0.0
    %1776 = vmatpush1.msra.mxu0 0.0
    %1777 = vmatprep.subr.mxu0 0.0
    %1778 = vmatpush1.msra.mxu0 0.0
    %1779 = vmatprep.subr.mxu0 0.0
    %1780 = vmatpush1.msra.mxu0 0.0
    %1781 = vmatprep.subr.mxu0 0.0
    %1782 = vmatpush1.msra.mxu0 0.0
    %1783 = vmatprep.subr.mxu0 0.0
    %1784 = vmatpush1.msra.mxu0 0.0
    %1785 = vmatprep.subr.mxu0 0.0
    %1786 = vmatpush1.msra.mxu0 0.0
    %1787 = vmatprep.subr.mxu0 0.0
    %1788 = vmatpush1.msra.mxu0 0.0
    %1789 = vmatprep.subr.mxu0 0.0
    %1790 = vmatpush1.msra.mxu0 0.0
    %1791 = vmatprep.subr.mxu0 0.0
    %1792 = vmatpush1.msra.mxu0 0.0
    %1793 = vmatprep.subr.mxu0 0.0
    %1794 = vmatpush1.msra.mxu0 0.0
    %1795 = vmatprep.subr.mxu0 0.0
    %1796 = vmatpush1.msra.mxu0 0.0
    %1797 = vmatprep.subr.mxu0 0.0
    %1798 = vmatpush1.msra.mxu0 0.0
    %1799 = vmatprep.subr.mxu0 0.0
    %1800 = vmatpush1.msra.mxu0 0.0
    %1801 = vmatprep.subr.mxu0 0.0
    %1802 = vmatpush1.msra.mxu0 0.0
    %1803 = vmatprep.subr.mxu0 0.0
    %1804 = vmatpush1.msra.mxu0 0.0
    %1805 = vmatprep.subr.mxu0 0.0
    %1806 = vmatpush1.msra.mxu0 0.0
    %1807 = vmatprep.mubr.f32.mxu0 0.0
    %v1808 = vand.u32 %v1156, 4294901760
    %1809 = vmatmul.mubr.f32.gmra.mrb[0].mxu0 %v1808
    %v1810 = vpop.f32.mrb[0].mxu0
    %v1811 = vadd.f32 %v1724, %v1810
    %v1812 = vpop.f32.mrb[0].mxu0
    %1813 = vdwg.mxu0
    %v1814 = vadd.f32 %v1811, %v1142
    %v1815 = vld [vmem:[%s5 + $0x2] sm:$0x1]
    %v1816 = vlaneseq
    %v1817 = vshrl.u32 %v1816, 7
    %v1818 = vsub.s32 0, %v1817
    %v1819 = vrot.slane %v1815, %v1818
    %v1820 = vadd.f32 %v1814, %v1819
    %v1821 = vmax.f32 %v1820, 0.0
    %1822 = vst [vmem:[#allocation11] sm:$0xff] %v1821
    // Predicated region
    $region46: #{tpu_custom_call.1} parent=1 // pred_check
      _
    $region47: #{tpu_custom_call.1} parent=1 // pred_check_branch
      %1824 = sbr.rel (0) target = $region49
    $region48: #{tpu_custom_call.1} parent=1 // pred_region
      %s1826 = ssub.s32 128, 128
      %1827 = vsyncadd [#allocation4], %s1826
      %s1829 = sshll.u32 [#allocation11], 4
      %s1830 = int_to_ptr.vmem [resolvable:$true] %s1829
      %1832 = dma.vmem_to_hbm [thread:$0]  %s1830, 128, %s6, [#allocation4]
    $region49: #{tpu_custom_call.1} parent=1 // pred_fallthru
      _
    // Predicated region
    $region50: #{tpu_custom_call.1} parent=1 // pred_check
      _
    $region51: #{tpu_custom_call.1} parent=1 // pred_check_branch
      %1834 = sbr.rel (0) target = $region53
    $region52: #{tpu_custom_call.1} parent=1 // pred_region
      %1835 = dma.done [#allocation4], 128
    $region53: #{tpu_custom_call.1} parent=1 // pred_fallthru
      _
    %1836 = vsyncpa [#allocation3], 1
    %1837 = vsyncpa [#allocation6], 1
    %1838 = vsyncpa [#allocation9], 1
    %1839 = vsyncpa [#allocation4], 1

</llo_original>
